<compile_context>
chip_gen: v5e
topology: v5e:2x2
jax: 0.10.0
libtpu: 0.0.40
codegen_flags: <defaults>
</compile_context>

<pallas_src>
import jax
import jax.numpy as jnp
from jax import lax
from jax.experimental import pallas as pl
from jax.experimental.pallas import tpu as pltpu


def _make_kernel(T, Bp, H, G):
    P = 4 * G  # packed gate width = 128 lanes (one vreg)

    def kernel(x_ref, wih0_ref, b0_ref, whh0_ref, wih1_ref, whh1_ref, b1_ref,
               wfc_ref, bfc_ref, out_ref, g0_ref, h1s_ref):
        # ---- (1) layer-0 input projection as ONE hoisted GEMM, bias folded in
        g0 = jnp.dot(x_ref[...], wih0_ref[...],
                     preferred_element_type=jnp.float32) + b0_ref[...]
        g0_ref[...] = g0                              # 2-D history, no reshape

        # ---- loop-invariant values hoisted once (a handful of vregs total)
        whh0 = whh0_ref[...]                          # (8, P) = 1 vreg each
        wih1 = wih1_ref[...]
        whh1 = whh1_ref[...]
        whh0_rows = [jnp.broadcast_to(whh0[k:k + 1, :], (Bp, P)) for k in range(H)]
        wih1_rows = [jnp.broadcast_to(wih1[k:k + 1, :], (Bp, P)) for k in range(H)]
        whh1_rows = [jnp.broadcast_to(whh1[k:k + 1, :], (Bp, P)) for k in range(H)]
        b1b = jnp.broadcast_to(b1_ref[...], (Bp, P))
        lane = lax.broadcasted_iota(jnp.int32, (Bp, P), 1)
        is_g = (lane >= 2 * G) & (lane < 3 * G)       # the tanh ("g") gate block

        def fma(acc, h, rows):
            # h @ W over the H real rows as broadcast-FMAs (VPU only, no MXU).
            for k in range(H):
                acc = acc + h[:, k:k + 1] * rows[k]
            return acc

        def update(gates, c):
            # i/f/o columns were pre-scaled by 0.5 at pack time, so a single
            # tanh EUP pass yields both tanh(z_g) and sigmoid(z) = 0.5*th+0.5.
            th = jnp.tanh(gates)
            act = jnp.where(is_g, th, 0.5 * th + 0.5)
            i = act[:, 0 * G:1 * G]
            f = act[:, 1 * G:2 * G]
            g = act[:, 2 * G:3 * G]
            o = act[:, 3 * G:4 * G]
            c_new = f * c + i * g
            h_new = o * jnp.tanh(c_new)
            return h_new, c_new

        def step(t, carry):
            h0, c0, h1, c1 = carry
            r0 = pl.multiple_of(t * Bp, Bp)
            # Layer-1 recurrent half first: depends only on the PREVIOUS h1,
            # so it overlaps layer-0's nonlinearity (split fused matmul).
            g1 = fma(b1b, h1, whh1_rows)
            # Layer-0 gates: hoisted input projection + recurrent FMA.
            gates0 = fma(g0_ref[pl.ds(r0, Bp), :], h0, whh0_rows)
            h0, c0 = update(gates0, c0)
            # Layer-1: add the half that needs the new h0, then update.
            g1 = fma(g1, h0, wih1_rows)
            h1, c1 = update(g1, c1)
            h1s_ref[pl.ds(r0, Bp), :] = h1            # save for the fused head
            return (h0, c0, h1, c1)

        z = jnp.zeros((Bp, G), jnp.float32)           # hx = None -> zeros
        lax.fori_loop(0, T, step, (z, z, z, z), unroll=True)

        # ---- (3) final Linear hoisted out of the loop: one GEMM + dense store
        y = jnp.dot(h1s_ref[...], wfc_ref[...],
                    preferred_element_type=jnp.float32) + bfc_ref[...]
        out_ref[...] = y.astype(out_ref.dtype)

    return kernel


def lstm_forward(x, params):
    """x: (T, B, I) float32 -> (T, B, O) float32 (seq, batch, feature)."""
    T, B, I = x.shape
    H = params["w_hh_l0"].shape[1]
    O = params["w_fc"].shape[0]

    LANE, SUB = 128, 8
    assert 4 * H <= LANE, "packed-gate path requires 4*hidden <= 128"
    G = LANE // 4                                  # per-gate lane block (32)
    P = 4 * G                                      # 128
    Ip = ((I + LANE - 1) // LANE) * LANE
    Op = ((O + LANE - 1) // LANE) * LANE
    Bp = ((B + SUB - 1) // SUB) * SUB
    Hr = SUB                                       # sublane-padded weight rows

    # PyTorch gate order [i, f, g, o]; i/f/o columns scaled by 0.5 (one-time
    # weight prep) so the kernel needs a single tanh per gate-set.
    gate_scale = jnp.array([0.5, 0.5, 1.0, 0.5], jnp.float32)

    def pack_w(w, k_pad):
        # w: (4H, K) PyTorch layout -> (k_pad, P), gate q at lanes [q*G, q*G+H)
        k = w.shape[1]
        wt = w.T.reshape(k, 4, H) * gate_scale[None, :, None]
        out = jnp.zeros((k_pad, 4, G), jnp.float32).at[:k, :, :H].set(wt)
        return out.reshape(k_pad, P)

    def pack_b(b):
        b4 = b.reshape(4, H) * gate_scale[:, None]
        return jnp.zeros((1, 4, G), jnp.float32).at[0, :, :H].set(b4).reshape(1, P)

    wih0 = pack_w(params["w_ih_l0"], Ip)                       # (Ip, P)
    whh0 = pack_w(params["w_hh_l0"], Hr)                       # (Hr, P)
    b0 = pack_b(params["b_ih_l0"] + params["b_hh_l0"])         # (1, P)
    wih1 = pack_w(params["w_ih_l1"], Hr)                       # (Hr, P)
    whh1 = pack_w(params["w_hh_l1"], Hr)                       # (Hr, P)
    b1 = pack_b(params["b_ih_l1"] + params["b_hh_l1"])         # (1, P)
    wfc = jnp.zeros((G, Op), jnp.float32).at[:H, :O].set(params["w_fc"].T)
    bfc = jnp.zeros((1, Op), jnp.float32).at[0, :O].set(params["b_fc"])

    xp = jnp.zeros((T, Bp, Ip), jnp.float32).at[:, :B, :I].set(x)
    x2d = xp.reshape(T * Bp, Ip)                   # XLA-side reshape (free)

    kernel = _make_kernel(T, Bp, H, G)
    out2d = pl.pallas_call(
        kernel,
        out_shape=jax.ShapeDtypeStruct((T * Bp, Op), jnp.float32),
        in_specs=[pl.BlockSpec(memory_space=pltpu.MemorySpace.VMEM)] * 9,
        out_specs=pl.BlockSpec(memory_space=pltpu.MemorySpace.VMEM),
        scratch_shapes=[pltpu.VMEM((T * Bp, P), jnp.float32),   # g0 history
                        pltpu.VMEM((T * Bp, G), jnp.float32)],  # h1 history
    )(x2d, wih0, b0, whh0, wih1, whh1, b1, wfc, bfc)

    return out2d.reshape(T, Bp, Op)[:, :B, :O]


def ref_forward(x, params):
    """Pure-JAX reference of the PyTorch module (for correctness check)."""
    T, B, _ = x.shape
    H = params["w_hh_l0"].shape[1]

    def cell(x_t, h, c, w_ih, w_hh, b_ih, b_hh):
        g = x_t @ w_ih.T + b_ih + h @ w_hh.T + b_hh
        i = jax.nn.sigmoid(g[:, 0 * H:1 * H])
        f = jax.nn.sigmoid(g[:, 1 * H:2 * H])
        gg = jnp.tanh(g[:, 2 * H:3 * H])
        o = jax.nn.sigmoid(g[:, 3 * H:4 * H])
        c = f * c + i * gg
        h = o * jnp.tanh(c)
        return h, c

    h0 = c0 = h1 = c1 = jnp.zeros((B, H), jnp.float32)
    outs = []
    for t in range(T):
        h0, c0 = cell(x[t], h0, c0, params["w_ih_l0"], params["w_hh_l0"],
                      params["b_ih_l0"], params["b_hh_l0"])
        h1, c1 = cell(h0, h1, c1, params["w_ih_l1"], params["w_hh_l1"],
                      params["b_ih_l1"], params["b_hh_l1"])
        outs.append(h1 @ params["w_fc"].T + params["b_fc"])
    return jnp.stack(outs, axis=0)


if __name__ == "__main__":
    # module defaults: input_size=2, hidden_size=4, output_size=1, num_layer=2
    I, H, O = 2, 4, 1
    T, B = 8, 2

    key = jax.random.PRNGKey(0)
    keys = jax.random.split(key, 11)
    bound = 1.0 / jnp.sqrt(jnp.float32(H))

    def u(k, shape):
        return jax.random.uniform(k, shape, jnp.float32, -bound, bound)

    params = {
        "w_ih_l0": u(keys[0], (4 * H, I)),
        "w_hh_l0": u(keys[1], (4 * H, H)),
        "b_ih_l0": u(keys[2], (4 * H,)),
        "b_hh_l0": u(keys[3], (4 * H,)),
        "w_ih_l1": u(keys[4], (4 * H, H)),
        "w_hh_l1": u(keys[5], (4 * H, H)),
        "b_ih_l1": u(keys[6], (4 * H,)),
        "b_hh_l1": u(keys[7], (4 * H,)),
        "w_fc":    u(keys[8], (O, H)),
        "b_fc":    u(keys[9], (O,)),
    }
    x = jax.random.normal(keys[10], (T, B, I), jnp.float32)

    out = jax.block_until_ready(lstm_forward(x, params))
    ref = ref_forward(x, params)

    assert out.shape == (T, B, O), out.shape
    assert bool(jnp.all(jnp.isfinite(out)))
    assert bool(jnp.allclose(out, ref, atol=1e-4, rtol=1e-4)), (
        f"max abs err {float(jnp.max(jnp.abs(out - ref)))}")
    print("KERNEL_OK")
</pallas_src>

<mosaic_0001>
module attributes {stable_mosaic.version = 11 : i64} {
  func.func @kernel(%arg0: memref<64x128xf32, #tpu.memory_space<vmem>>, %arg1: memref<128x128xf32, #tpu.memory_space<vmem>>, %arg2: memref<1x128xf32, #tpu.memory_space<vmem>>, %arg3: memref<8x128xf32, #tpu.memory_space<vmem>>, %arg4: memref<8x128xf32, #tpu.memory_space<vmem>>, %arg5: memref<8x128xf32, #tpu.memory_space<vmem>>, %arg6: memref<1x128xf32, #tpu.memory_space<vmem>>, %arg7: memref<32x128xf32, #tpu.memory_space<vmem>>, %arg8: memref<1x128xf32, #tpu.memory_space<vmem>>, %arg9: memref<64x128xf32, #tpu.memory_space<vmem>>, %arg10: memref<64x128xf32, #tpu.memory_space<vmem>>, %arg11: memref<64x32xf32, #tpu.memory_space<vmem>>) attributes {dimension_semantics = [], scalar_prefetch = 0 : i64, scratch_operands = 2 : i64, tpu.core_type = #tpu.core_type<tc>} {
    %c0 = arith.constant 0 : index
    %c0_0 = arith.constant 0 : index
    %0 = vector.load %arg0[%c0, %c0_0] : memref<64x128xf32, #tpu.memory_space<vmem>>, vector<64x128xf32>
    %c0_1 = arith.constant 0 : index
    %c0_2 = arith.constant 0 : index
    %1 = vector.load %arg1[%c0_1, %c0_2] : memref<128x128xf32, #tpu.memory_space<vmem>>, vector<128x128xf32>
    %cst = arith.constant dense<0.000000e+00> : vector<64x128xf32>
    %2 = tpu.matmul %0, %1, %cst {dimension_numbers = #tpu.dot_dimension_numbers<[1], [0], [0], [1], [0, 0, 1, 1], [], []>} : vector<64x128xf32>, vector<128x128xf32>, vector<64x128xf32> -> vector<64x128xf32>
    %c0_3 = arith.constant 0 : index
    %c0_4 = arith.constant 0 : index
    %3 = vector.load %arg2[%c0_3, %c0_4] : memref<1x128xf32, #tpu.memory_space<vmem>>, vector<1x128xf32>
    %4 = vector.broadcast %3 : vector<1x128xf32> to vector<64x128xf32>
    %5 = arith.addf %2, %4 : vector<64x128xf32>
    %c0_5 = arith.constant 0 : index
    %c0_6 = arith.constant 0 : index
    %6 = vector.load %arg10[%c0_5, %c0_6] : memref<64x128xf32, #tpu.memory_space<vmem>>, vector<64x128xf32>
    tpu.vector_store %arg10[%c0_5, %c0_6], %5 {strides = array<i32>} : memref<64x128xf32, #tpu.memory_space<vmem>>, vector<64x128xf32>,
    %c0_7 = arith.constant 0 : index
    %c0_8 = arith.constant 0 : index
    %7 = vector.load %arg3[%c0_7, %c0_8] : memref<8x128xf32, #tpu.memory_space<vmem>>, vector<8x128xf32>
    %c0_9 = arith.constant 0 : index
    %c0_10 = arith.constant 0 : index
    %8 = vector.load %arg4[%c0_9, %c0_10] : memref<8x128xf32, #tpu.memory_space<vmem>>, vector<8x128xf32>
    %c0_11 = arith.constant 0 : index
    %c0_12 = arith.constant 0 : index
    %9 = vector.load %arg5[%c0_11, %c0_12] : memref<8x128xf32, #tpu.memory_space<vmem>>, vector<8x128xf32>
    %10 = vector.extract_strided_slice %7 {offsets = [0, 0], sizes = [1, 128], strides = [1, 1]} : vector<8x128xf32> to vector<1x128xf32>
    %11 = vector.shape_cast %10 : vector<1x128xf32> to vector<1x128xf32>
    %12 = vector.broadcast %11 : vector<1x128xf32> to vector<8x128xf32>
    %13 = vector.extract_strided_slice %7 {offsets = [1, 0], sizes = [1, 128], strides = [1, 1]} : vector<8x128xf32> to vector<1x128xf32>
    %14 = vector.shape_cast %13 : vector<1x128xf32> to vector<1x128xf32>
    %15 = vector.broadcast %14 : vector<1x128xf32> to vector<8x128xf32>
    %16 = vector.extract_strided_slice %7 {offsets = [2, 0], sizes = [1, 128], strides = [1, 1]} : vector<8x128xf32> to vector<1x128xf32>
    %17 = vector.shape_cast %16 : vector<1x128xf32> to vector<1x128xf32>
    %18 = vector.broadcast %17 : vector<1x128xf32> to vector<8x128xf32>
    %19 = vector.extract_strided_slice %7 {offsets = [3, 0], sizes = [1, 128], strides = [1, 1]} : vector<8x128xf32> to vector<1x128xf32>
    %20 = vector.shape_cast %19 : vector<1x128xf32> to vector<1x128xf32>
    %21 = vector.broadcast %20 : vector<1x128xf32> to vector<8x128xf32>
    %22 = vector.extract_strided_slice %8 {offsets = [0, 0], sizes = [1, 128], strides = [1, 1]} : vector<8x128xf32> to vector<1x128xf32>
    %23 = vector.shape_cast %22 : vector<1x128xf32> to vector<1x128xf32>
    %24 = vector.broadcast %23 : vector<1x128xf32> to vector<8x128xf32>
    %25 = vector.extract_strided_slice %8 {offsets = [1, 0], sizes = [1, 128], strides = [1, 1]} : vector<8x128xf32> to vector<1x128xf32>
    %26 = vector.shape_cast %25 : vector<1x128xf32> to vector<1x128xf32>
    %27 = vector.broadcast %26 : vector<1x128xf32> to vector<8x128xf32>
    %28 = vector.extract_strided_slice %8 {offsets = [2, 0], sizes = [1, 128], strides = [1, 1]} : vector<8x128xf32> to vector<1x128xf32>
    %29 = vector.shape_cast %28 : vector<1x128xf32> to vector<1x128xf32>
    %30 = vector.broadcast %29 : vector<1x128xf32> to vector<8x128xf32>
    %31 = vector.extract_strided_slice %8 {offsets = [3, 0], sizes = [1, 128], strides = [1, 1]} : vector<8x128xf32> to vector<1x128xf32>
    %32 = vector.shape_cast %31 : vector<1x128xf32> to vector<1x128xf32>
    %33 = vector.broadcast %32 : vector<1x128xf32> to vector<8x128xf32>
    %34 = vector.extract_strided_slice %9 {offsets = [0, 0], sizes = [1, 128], strides = [1, 1]} : vector<8x128xf32> to vector<1x128xf32>
    %35 = vector.shape_cast %34 : vector<1x128xf32> to vector<1x128xf32>
    %36 = vector.broadcast %35 : vector<1x128xf32> to vector<8x128xf32>
    %37 = vector.extract_strided_slice %9 {offsets = [1, 0], sizes = [1, 128], strides = [1, 1]} : vector<8x128xf32> to vector<1x128xf32>
    %38 = vector.shape_cast %37 : vector<1x128xf32> to vector<1x128xf32>
    %39 = vector.broadcast %38 : vector<1x128xf32> to vector<8x128xf32>
    %40 = vector.extract_strided_slice %9 {offsets = [2, 0], sizes = [1, 128], strides = [1, 1]} : vector<8x128xf32> to vector<1x128xf32>
    %41 = vector.shape_cast %40 : vector<1x128xf32> to vector<1x128xf32>
    %42 = vector.broadcast %41 : vector<1x128xf32> to vector<8x128xf32>
    %43 = vector.extract_strided_slice %9 {offsets = [3, 0], sizes = [1, 128], strides = [1, 1]} : vector<8x128xf32> to vector<1x128xf32>
    %44 = vector.shape_cast %43 : vector<1x128xf32> to vector<1x128xf32>
    %45 = vector.broadcast %44 : vector<1x128xf32> to vector<8x128xf32>
    %c0_13 = arith.constant 0 : index
    %c0_14 = arith.constant 0 : index
    %46 = vector.load %arg6[%c0_13, %c0_14] : memref<1x128xf32, #tpu.memory_space<vmem>>, vector<1x128xf32>
    %47 = vector.shape_cast %46 : vector<1x128xf32> to vector<1x128xf32>
    %48 = vector.broadcast %47 : vector<1x128xf32> to vector<8x128xf32>
    %49 = tpu.iota {dimensions = array<i32: 1>} : vector<8x128xi32>
    %c64_i32 = arith.constant 64 : i32
    %50 = vector.broadcast %c64_i32 : i32 to vector<8x128xi32>
    %51 = arith.cmpi sge, %49, %50 : vector<8x128xi32>
    %c96_i32 = arith.constant 96 : i32
    %52 = vector.broadcast %c96_i32 : i32 to vector<8x128xi32>
    %53 = arith.cmpi slt, %49, %52 : vector<8x128xi32>
    %54 = arith.andi %51, %53 : vector<8x128xi1>
    %cst_15 = arith.constant 0.000000e+00 : f32
    %55 = vector.broadcast %cst_15 : f32 to vector<8x32xf32>
    %c0_i32 = arith.constant 0 : i32
    %c8_i32 = arith.constant 8 : i32
    %56 = arith.muli %c0_i32, %c8_i32 : i32
    %57 = tpu.assume_multiple %56, 8 : i32
    %58 = vector.extract_strided_slice %55 {offsets = [0, 0], sizes = [8, 1], strides = [1, 1]} : vector<8x32xf32> to vector<8x1xf32>
    %59 = vector.broadcast %58 : vector<8x1xf32> to vector<8x128xf32>
    %60 = arith.mulf %59, %36 : vector<8x128xf32>
    %61 = arith.addf %48, %60 : vector<8x128xf32>
    %62 = vector.extract_strided_slice %55 {offsets = [0, 1], sizes = [8, 1], strides = [1, 1]} : vector<8x32xf32> to vector<8x1xf32>
    %63 = vector.broadcast %62 : vector<8x1xf32> to vector<8x128xf32>
    %64 = arith.mulf %63, %39 : vector<8x128xf32>
    %65 = arith.addf %61, %64 : vector<8x128xf32>
    %66 = vector.extract_strided_slice %55 {offsets = [0, 2], sizes = [8, 1], strides = [1, 1]} : vector<8x32xf32> to vector<8x1xf32>
    %67 = vector.broadcast %66 : vector<8x1xf32> to vector<8x128xf32>
    %68 = arith.mulf %67, %42 : vector<8x128xf32>
    %69 = arith.addf %65, %68 : vector<8x128xf32>
    %70 = vector.extract_strided_slice %55 {offsets = [0, 3], sizes = [8, 1], strides = [1, 1]} : vector<8x32xf32> to vector<8x1xf32>
    %71 = vector.broadcast %70 : vector<8x1xf32> to vector<8x128xf32>
    %72 = arith.mulf %71, %45 : vector<8x128xf32>
    %73 = arith.addf %69, %72 : vector<8x128xf32>
    %74 = arith.index_cast %57 : i32 to index
    %c0_16 = arith.constant 0 : index
    %75 = vector.load %arg10[%74, %c0_16] : memref<64x128xf32, #tpu.memory_space<vmem>>, vector<8x128xf32>
    %76 = vector.extract_strided_slice %55 {offsets = [0, 0], sizes = [8, 1], strides = [1, 1]} : vector<8x32xf32> to vector<8x1xf32>
    %77 = vector.broadcast %76 : vector<8x1xf32> to vector<8x128xf32>
    %78 = arith.mulf %77, %12 : vector<8x128xf32>
    %79 = arith.addf %75, %78 : vector<8x128xf32>
    %80 = vector.extract_strided_slice %55 {offsets = [0, 1], sizes = [8, 1], strides = [1, 1]} : vector<8x32xf32> to vector<8x1xf32>
    %81 = vector.broadcast %80 : vector<8x1xf32> to vector<8x128xf32>
    %82 = arith.mulf %81, %15 : vector<8x128xf32>
    %83 = arith.addf %79, %82 : vector<8x128xf32>
    %84 = vector.extract_strided_slice %55 {offsets = [0, 2], sizes = [8, 1], strides = [1, 1]} : vector<8x32xf32> to vector<8x1xf32>
    %85 = vector.broadcast %84 : vector<8x1xf32> to vector<8x128xf32>
    %86 = arith.mulf %85, %18 : vector<8x128xf32>
    %87 = arith.addf %83, %86 : vector<8x128xf32>
    %88 = vector.extract_strided_slice %55 {offsets = [0, 3], sizes = [8, 1], strides = [1, 1]} : vector<8x32xf32> to vector<8x1xf32>
    %89 = vector.broadcast %88 : vector<8x1xf32> to vector<8x128xf32>
    %90 = arith.mulf %89, %21 : vector<8x128xf32>
    %91 = arith.addf %87, %90 : vector<8x128xf32>
    %92 = math.tanh %91 : vector<8x128xf32>
    %cst_17 = arith.constant 5.000000e-01 : f32
    %93 = vector.broadcast %cst_17 : f32 to vector<8x128xf32>
    %94 = arith.mulf %93, %92 : vector<8x128xf32>
    %cst_18 = arith.constant 5.000000e-01 : f32
    %95 = vector.broadcast %cst_18 : f32 to vector<8x128xf32>
    %96 = arith.addf %94, %95 : vector<8x128xf32>
    %97 = arith.select %54, %92, %96 : vector<8x128xi1>, vector<8x128xf32>
    %98 = vector.extract_strided_slice %97 {offsets = [0, 0], sizes = [8, 32], strides = [1, 1]} : vector<8x128xf32> to vector<8x32xf32>
    %99 = vector.extract_strided_slice %97 {offsets = [0, 32], sizes = [8, 32], strides = [1, 1]} : vector<8x128xf32> to vector<8x32xf32>
    %100 = vector.extract_strided_slice %97 {offsets = [0, 64], sizes = [8, 32], strides = [1, 1]} : vector<8x128xf32> to vector<8x32xf32>
    %101 = vector.extract_strided_slice %97 {offsets = [0, 96], sizes = [8, 32], strides = [1, 1]} : vector<8x128xf32> to vector<8x32xf32>
    %102 = arith.mulf %99, %55 : vector<8x32xf32>
    %103 = arith.mulf %98, %100 : vector<8x32xf32>
    %104 = arith.addf %102, %103 : vector<8x32xf32>
    %105 = math.tanh %104 : vector<8x32xf32>
    %106 = arith.mulf %101, %105 : vector<8x32xf32>
    %107 = vector.extract_strided_slice %106 {offsets = [0, 0], sizes = [8, 1], strides = [1, 1]} : vector<8x32xf32> to vector<8x1xf32>
    %108 = vector.broadcast %107 : vector<8x1xf32> to vector<8x128xf32>
    %109 = arith.mulf %108, %24 : vector<8x128xf32>
    %110 = arith.addf %73, %109 : vector<8x128xf32>
    %111 = vector.extract_strided_slice %106 {offsets = [0, 1], sizes = [8, 1], strides = [1, 1]} : vector<8x32xf32> to vector<8x1xf32>
    %112 = vector.broadcast %111 : vector<8x1xf32> to vector<8x128xf32>
    %113 = arith.mulf %112, %27 : vector<8x128xf32>
    %114 = arith.addf %110, %113 : vector<8x128xf32>
    %115 = vector.extract_strided_slice %106 {offsets = [0, 2], sizes = [8, 1], strides = [1, 1]} : vector<8x32xf32> to vector<8x1xf32>
    %116 = vector.broadcast %115 : vector<8x1xf32> to vector<8x128xf32>
    %117 = arith.mulf %116, %30 : vector<8x128xf32>
    %118 = arith.addf %114, %117 : vector<8x128xf32>
    %119 = vector.extract_strided_slice %106 {offsets = [0, 3], sizes = [8, 1], strides = [1, 1]} : vector<8x32xf32> to vector<8x1xf32>
    %120 = vector.broadcast %119 : vector<8x1xf32> to vector<8x128xf32>
    %121 = arith.mulf %120, %33 : vector<8x128xf32>
    %122 = arith.addf %118, %121 : vector<8x128xf32>
    %123 = math.tanh %122 : vector<8x128xf32>
    %cst_19 = arith.constant 5.000000e-01 : f32
    %124 = vector.broadcast %cst_19 : f32 to vector<8x128xf32>
    %125 = arith.mulf %124, %123 : vector<8x128xf32>
    %cst_20 = arith.constant 5.000000e-01 : f32
    %126 = vector.broadcast %cst_20 : f32 to vector<8x128xf32>
    %127 = arith.addf %125, %126 : vector<8x128xf32>
    %128 = arith.select %54, %123, %127 : vector<8x128xi1>, vector<8x128xf32>
    %129 = vector.extract_strided_slice %128 {offsets = [0, 0], sizes = [8, 32], strides = [1, 1]} : vector<8x128xf32> to vector<8x32xf32>
    %130 = vector.extract_strided_slice %128 {offsets = [0, 32], sizes = [8, 32], strides = [1, 1]} : vector<8x128xf32> to vector<8x32xf32>
    %131 = vector.extract_strided_slice %128 {offsets = [0, 64], sizes = [8, 32], strides = [1, 1]} : vector<8x128xf32> to vector<8x32xf32>
    %132 = vector.extract_strided_slice %128 {offsets = [0, 96], sizes = [8, 32], strides = [1, 1]} : vector<8x128xf32> to vector<8x32xf32>
    %133 = arith.mulf %130, %55 : vector<8x32xf32>
    %134 = arith.mulf %129, %131 : vector<8x32xf32>
    %135 = arith.addf %133, %134 : vector<8x32xf32>
    %136 = math.tanh %135 : vector<8x32xf32>
    %137 = arith.mulf %132, %136 : vector<8x32xf32>
    %138 = arith.index_cast %57 : i32 to index
    %c0_21 = arith.constant 0 : index
    %139 = vector.load %arg11[%138, %c0_21] : memref<64x32xf32, #tpu.memory_space<vmem>>, vector<8x32xf32>
    tpu.vector_store %arg11[%138, %c0_21], %137 {strides = array<i32>} : memref<64x32xf32, #tpu.memory_space<vmem>>, vector<8x32xf32>,
    %c1_i32 = arith.constant 1 : i32
    %c8_i32_22 = arith.constant 8 : i32
    %140 = arith.muli %c1_i32, %c8_i32_22 : i32
    %141 = tpu.assume_multiple %140, 8 : i32
    %142 = vector.extract_strided_slice %137 {offsets = [0, 0], sizes = [8, 1], strides = [1, 1]} : vector<8x32xf32> to vector<8x1xf32>
    %143 = vector.broadcast %142 : vector<8x1xf32> to vector<8x128xf32>
    %144 = arith.mulf %143, %36 : vector<8x128xf32>
    %145 = arith.addf %48, %144 : vector<8x128xf32>
    %146 = vector.extract_strided_slice %137 {offsets = [0, 1], sizes = [8, 1], strides = [1, 1]} : vector<8x32xf32> to vector<8x1xf32>
    %147 = vector.broadcast %146 : vector<8x1xf32> to vector<8x128xf32>
    %148 = arith.mulf %147, %39 : vector<8x128xf32>
    %149 = arith.addf %145, %148 : vector<8x128xf32>
    %150 = vector.extract_strided_slice %137 {offsets = [0, 2], sizes = [8, 1], strides = [1, 1]} : vector<8x32xf32> to vector<8x1xf32>
    %151 = vector.broadcast %150 : vector<8x1xf32> to vector<8x128xf32>
    %152 = arith.mulf %151, %42 : vector<8x128xf32>
    %153 = arith.addf %149, %152 : vector<8x128xf32>
    %154 = vector.extract_strided_slice %137 {offsets = [0, 3], sizes = [8, 1], strides = [1, 1]} : vector<8x32xf32> to vector<8x1xf32>
    %155 = vector.broadcast %154 : vector<8x1xf32> to vector<8x128xf32>
    %156 = arith.mulf %155, %45 : vector<8x128xf32>
    %157 = arith.addf %153, %156 : vector<8x128xf32>
    %158 = arith.index_cast %141 : i32 to index
    %c0_23 = arith.constant 0 : index
    %159 = vector.load %arg10[%158, %c0_23] : memref<64x128xf32, #tpu.memory_space<vmem>>, vector<8x128xf32>
    %160 = vector.extract_strided_slice %106 {offsets = [0, 0], sizes = [8, 1], strides = [1, 1]} : vector<8x32xf32> to vector<8x1xf32>
    %161 = vector.broadcast %160 : vector<8x1xf32> to vector<8x128xf32>
    %162 = arith.mulf %161, %12 : vector<8x128xf32>
    %163 = arith.addf %159, %162 : vector<8x128xf32>
    %164 = vector.extract_strided_slice %106 {offsets = [0, 1], sizes = [8, 1], strides = [1, 1]} : vector<8x32xf32> to vector<8x1xf32>
    %165 = vector.broadcast %164 : vector<8x1xf32> to vector<8x128xf32>
    %166 = arith.mulf %165, %15 : vector<8x128xf32>
    %167 = arith.addf %163, %166 : vector<8x128xf32>
    %168 = vector.extract_strided_slice %106 {offsets = [0, 2], sizes = [8, 1], strides = [1, 1]} : vector<8x32xf32> to vector<8x1xf32>
    %169 = vector.broadcast %168 : vector<8x1xf32> to vector<8x128xf32>
    %170 = arith.mulf %169, %18 : vector<8x128xf32>
    %171 = arith.addf %167, %170 : vector<8x128xf32>
    %172 = vector.extract_strided_slice %106 {offsets = [0, 3], sizes = [8, 1], strides = [1, 1]} : vector<8x32xf32> to vector<8x1xf32>
    %173 = vector.broadcast %172 : vector<8x1xf32> to vector<8x128xf32>
    %174 = arith.mulf %173, %21 : vector<8x128xf32>
    %175 = arith.addf %171, %174 : vector<8x128xf32>
    %176 = math.tanh %175 : vector<8x128xf32>
    %cst_24 = arith.constant 5.000000e-01 : f32
    %177 = vector.broadcast %cst_24 : f32 to vector<8x128xf32>
    %178 = arith.mulf %177, %176 : vector<8x128xf32>
    %cst_25 = arith.constant 5.000000e-01 : f32
    %179 = vector.broadcast %cst_25 : f32 to vector<8x128xf32>
    %180 = arith.addf %178, %179 : vector<8x128xf32>
    %181 = arith.select %54, %176, %180 : vector<8x128xi1>, vector<8x128xf32>
    %182 = vector.extract_strided_slice %181 {offsets = [0, 0], sizes = [8, 32], strides = [1, 1]} : vector<8x128xf32> to vector<8x32xf32>
    %183 = vector.extract_strided_slice %181 {offsets = [0, 32], sizes = [8, 32], strides = [1, 1]} : vector<8x128xf32> to vector<8x32xf32>
    %184 = vector.extract_strided_slice %181 {offsets = [0, 64], sizes = [8, 32], strides = [1, 1]} : vector<8x128xf32> to vector<8x32xf32>
    %185 = vector.extract_strided_slice %181 {offsets = [0, 96], sizes = [8, 32], strides = [1, 1]} : vector<8x128xf32> to vector<8x32xf32>
    %186 = arith.mulf %183, %104 : vector<8x32xf32>
    %187 = arith.mulf %182, %184 : vector<8x32xf32>
    %188 = arith.addf %186, %187 : vector<8x32xf32>
    %189 = math.tanh %188 : vector<8x32xf32>
    %190 = arith.mulf %185, %189 : vector<8x32xf32>
    %191 = vector.extract_strided_slice %190 {offsets = [0, 0], sizes = [8, 1], strides = [1, 1]} : vector<8x32xf32> to vector<8x1xf32>
    %192 = vector.broadcast %191 : vector<8x1xf32> to vector<8x128xf32>
    %193 = arith.mulf %192, %24 : vector<8x128xf32>
    %194 = arith.addf %157, %193 : vector<8x128xf32>
    %195 = vector.extract_strided_slice %190 {offsets = [0, 1], sizes = [8, 1], strides = [1, 1]} : vector<8x32xf32> to vector<8x1xf32>
    %196 = vector.broadcast %195 : vector<8x1xf32> to vector<8x128xf32>
    %197 = arith.mulf %196, %27 : vector<8x128xf32>
    %198 = arith.addf %194, %197 : vector<8x128xf32>
    %199 = vector.extract_strided_slice %190 {offsets = [0, 2], sizes = [8, 1], strides = [1, 1]} : vector<8x32xf32> to vector<8x1xf32>
    %200 = vector.broadcast %199 : vector<8x1xf32> to vector<8x128xf32>
    %201 = arith.mulf %200, %30 : vector<8x128xf32>
    %202 = arith.addf %198, %201 : vector<8x128xf32>
    %203 = vector.extract_strided_slice %190 {offsets = [0, 3], sizes = [8, 1], strides = [1, 1]} : vector<8x32xf32> to vector<8x1xf32>
    %204 = vector.broadcast %203 : vector<8x1xf32> to vector<8x128xf32>
    %205 = arith.mulf %204, %33 : vector<8x128xf32>
    %206 = arith.addf %202, %205 : vector<8x128xf32>
    %207 = math.tanh %206 : vector<8x128xf32>
    %cst_26 = arith.constant 5.000000e-01 : f32
    %208 = vector.broadcast %cst_26 : f32 to vector<8x128xf32>
    %209 = arith.mulf %208, %207 : vector<8x128xf32>
    %cst_27 = arith.constant 5.000000e-01 : f32
    %210 = vector.broadcast %cst_27 : f32 to vector<8x128xf32>
    %211 = arith.addf %209, %210 : vector<8x128xf32>
    %212 = arith.select %54, %207, %211 : vector<8x128xi1>, vector<8x128xf32>
    %213 = vector.extract_strided_slice %212 {offsets = [0, 0], sizes = [8, 32], strides = [1, 1]} : vector<8x128xf32> to vector<8x32xf32>
    %214 = vector.extract_strided_slice %212 {offsets = [0, 32], sizes = [8, 32], strides = [1, 1]} : vector<8x128xf32> to vector<8x32xf32>
    %215 = vector.extract_strided_slice %212 {offsets = [0, 64], sizes = [8, 32], strides = [1, 1]} : vector<8x128xf32> to vector<8x32xf32>
    %216 = vector.extract_strided_slice %212 {offsets = [0, 96], sizes = [8, 32], strides = [1, 1]} : vector<8x128xf32> to vector<8x32xf32>
    %217 = arith.mulf %214, %135 : vector<8x32xf32>
    %218 = arith.mulf %213, %215 : vector<8x32xf32>
    %219 = arith.addf %217, %218 : vector<8x32xf32>
    %220 = math.tanh %219 : vector<8x32xf32>
    %221 = arith.mulf %216, %220 : vector<8x32xf32>
    %222 = arith.index_cast %141 : i32 to index
    %c0_28 = arith.constant 0 : index
    %223 = vector.load %arg11[%222, %c0_28] : memref<64x32xf32, #tpu.memory_space<vmem>>, vector<8x32xf32>
    tpu.vector_store %arg11[%222, %c0_28], %221 {strides = array<i32>} : memref<64x32xf32, #tpu.memory_space<vmem>>, vector<8x32xf32>,
    %c2_i32 = arith.constant 2 : i32
    %c8_i32_29 = arith.constant 8 : i32
    %224 = arith.muli %c2_i32, %c8_i32_29 : i32
    %225 = tpu.assume_multiple %224, 8 : i32
    %226 = vector.extract_strided_slice %221 {offsets = [0, 0], sizes = [8, 1], strides = [1, 1]} : vector<8x32xf32> to vector<8x1xf32>
    %227 = vector.broadcast %226 : vector<8x1xf32> to vector<8x128xf32>
    %228 = arith.mulf %227, %36 : vector<8x128xf32>
    %229 = arith.addf %48, %228 : vector<8x128xf32>
    %230 = vector.extract_strided_slice %221 {offsets = [0, 1], sizes = [8, 1], strides = [1, 1]} : vector<8x32xf32> to vector<8x1xf32>
    %231 = vector.broadcast %230 : vector<8x1xf32> to vector<8x128xf32>
    %232 = arith.mulf %231, %39 : vector<8x128xf32>
    %233 = arith.addf %229, %232 : vector<8x128xf32>
    %234 = vector.extract_strided_slice %221 {offsets = [0, 2], sizes = [8, 1], strides = [1, 1]} : vector<8x32xf32> to vector<8x1xf32>
    %235 = vector.broadcast %234 : vector<8x1xf32> to vector<8x128xf32>
    %236 = arith.mulf %235, %42 : vector<8x128xf32>
    %237 = arith.addf %233, %236 : vector<8x128xf32>
    %238 = vector.extract_strided_slice %221 {offsets = [0, 3], sizes = [8, 1], strides = [1, 1]} : vector<8x32xf32> to vector<8x1xf32>
    %239 = vector.broadcast %238 : vector<8x1xf32> to vector<8x128xf32>
    %240 = arith.mulf %239, %45 : vector<8x128xf32>
    %241 = arith.addf %237, %240 : vector<8x128xf32>
    %242 = arith.index_cast %225 : i32 to index
    %c0_30 = arith.constant 0 : index
    %243 = vector.load %arg10[%242, %c0_30] : memref<64x128xf32, #tpu.memory_space<vmem>>, vector<8x128xf32>
    %244 = vector.extract_strided_slice %190 {offsets = [0, 0], sizes = [8, 1], strides = [1, 1]} : vector<8x32xf32> to vector<8x1xf32>
    %245 = vector.broadcast %244 : vector<8x1xf32> to vector<8x128xf32>
    %246 = arith.mulf %245, %12 : vector<8x128xf32>
    %247 = arith.addf %243, %246 : vector<8x128xf32>
    %248 = vector.extract_strided_slice %190 {offsets = [0, 1], sizes = [8, 1], strides = [1, 1]} : vector<8x32xf32> to vector<8x1xf32>
    %249 = vector.broadcast %248 : vector<8x1xf32> to vector<8x128xf32>
    %250 = arith.mulf %249, %15 : vector<8x128xf32>
    %251 = arith.addf %247, %250 : vector<8x128xf32>
    %252 = vector.extract_strided_slice %190 {offsets = [0, 2], sizes = [8, 1], strides = [1, 1]} : vector<8x32xf32> to vector<8x1xf32>
    %253 = vector.broadcast %252 : vector<8x1xf32> to vector<8x128xf32>
    %254 = arith.mulf %253, %18 : vector<8x128xf32>
    %255 = arith.addf %251, %254 : vector<8x128xf32>
    %256 = vector.extract_strided_slice %190 {offsets = [0, 3], sizes = [8, 1], strides = [1, 1]} : vector<8x32xf32> to vector<8x1xf32>
    %257 = vector.broadcast %256 : vector<8x1xf32> to vector<8x128xf32>
    %258 = arith.mulf %257, %21 : vector<8x128xf32>
    %259 = arith.addf %255, %258 : vector<8x128xf32>
    %260 = math.tanh %259 : vector<8x128xf32>
    %cst_31 = arith.constant 5.000000e-01 : f32
    %261 = vector.broadcast %cst_31 : f32 to vector<8x128xf32>
    %262 = arith.mulf %261, %260 : vector<8x128xf32>
    %cst_32 = arith.constant 5.000000e-01 : f32
    %263 = vector.broadcast %cst_32 : f32 to vector<8x128xf32>
    %264 = arith.addf %262, %263 : vector<8x128xf32>
    %265 = arith.select %54, %260, %264 : vector<8x128xi1>, vector<8x128xf32>
    %266 = vector.extract_strided_slice %265 {offsets = [0, 0], sizes = [8, 32], strides = [1, 1]} : vector<8x128xf32> to vector<8x32xf32>
    %267 = vector.extract_strided_slice %265 {offsets = [0, 32], sizes = [8, 32], strides = [1, 1]} : vector<8x128xf32> to vector<8x32xf32>
    %268 = vector.extract_strided_slice %265 {offsets = [0, 64], sizes = [8, 32], strides = [1, 1]} : vector<8x128xf32> to vector<8x32xf32>
    %269 = vector.extract_strided_slice %265 {offsets = [0, 96], sizes = [8, 32], strides = [1, 1]} : vector<8x128xf32> to vector<8x32xf32>
    %270 = arith.mulf %267, %188 : vector<8x32xf32>
    %271 = arith.mulf %266, %268 : vector<8x32xf32>
    %272 = arith.addf %270, %271 : vector<8x32xf32>
    %273 = math.tanh %272 : vector<8x32xf32>
    %274 = arith.mulf %269, %273 : vector<8x32xf32>
    %275 = vector.extract_strided_slice %274 {offsets = [0, 0], sizes = [8, 1], strides = [1, 1]} : vector<8x32xf32> to vector<8x1xf32>
    %276 = vector.broadcast %275 : vector<8x1xf32> to vector<8x128xf32>
    %277 = arith.mulf %276, %24 : vector<8x128xf32>
    %278 = arith.addf %241, %277 : vector<8x128xf32>
    %279 = vector.extract_strided_slice %274 {offsets = [0, 1], sizes = [8, 1], strides = [1, 1]} : vector<8x32xf32> to vector<8x1xf32>
    %280 = vector.broadcast %279 : vector<8x1xf32> to vector<8x128xf32>
    %281 = arith.mulf %280, %27 : vector<8x128xf32>
    %282 = arith.addf %278, %281 : vector<8x128xf32>
    %283 = vector.extract_strided_slice %274 {offsets = [0, 2], sizes = [8, 1], strides = [1, 1]} : vector<8x32xf32> to vector<8x1xf32>
    %284 = vector.broadcast %283 : vector<8x1xf32> to vector<8x128xf32>
    %285 = arith.mulf %284, %30 : vector<8x128xf32>
    %286 = arith.addf %282, %285 : vector<8x128xf32>
    %287 = vector.extract_strided_slice %274 {offsets = [0, 3], sizes = [8, 1], strides = [1, 1]} : vector<8x32xf32> to vector<8x1xf32>
    %288 = vector.broadcast %287 : vector<8x1xf32> to vector<8x128xf32>
    %289 = arith.mulf %288, %33 : vector<8x128xf32>
    %290 = arith.addf %286, %289 : vector<8x128xf32>
    %291 = math.tanh %290 : vector<8x128xf32>
    %cst_33 = arith.constant 5.000000e-01 : f32
    %292 = vector.broadcast %cst_33 : f32 to vector<8x128xf32>
    %293 = arith.mulf %292, %291 : vector<8x128xf32>
    %cst_34 = arith.constant 5.000000e-01 : f32
    %294 = vector.broadcast %cst_34 : f32 to vector<8x128xf32>
    %295 = arith.addf %293, %294 : vector<8x128xf32>
    %296 = arith.select %54, %291, %295 : vector<8x128xi1>, vector<8x128xf32>
    %297 = vector.extract_strided_slice %296 {offsets = [0, 0], sizes = [8, 32], strides = [1, 1]} : vector<8x128xf32> to vector<8x32xf32>
    %298 = vector.extract_strided_slice %296 {offsets = [0, 32], sizes = [8, 32], strides = [1, 1]} : vector<8x128xf32> to vector<8x32xf32>
    %299 = vector.extract_strided_slice %296 {offsets = [0, 64], sizes = [8, 32], strides = [1, 1]} : vector<8x128xf32> to vector<8x32xf32>
    %300 = vector.extract_strided_slice %296 {offsets = [0, 96], sizes = [8, 32], strides = [1, 1]} : vector<8x128xf32> to vector<8x32xf32>
    %301 = arith.mulf %298, %219 : vector<8x32xf32>
    %302 = arith.mulf %297, %299 : vector<8x32xf32>
    %303 = arith.addf %301, %302 : vector<8x32xf32>
    %304 = math.tanh %303 : vector<8x32xf32>
    %305 = arith.mulf %300, %304 : vector<8x32xf32>
    %306 = arith.index_cast %225 : i32 to index
    %c0_35 = arith.constant 0 : index
    %307 = vector.load %arg11[%306, %c0_35] : memref<64x32xf32, #tpu.memory_space<vmem>>, vector<8x32xf32>
    tpu.vector_store %arg11[%306, %c0_35], %305 {strides = array<i32>} : memref<64x32xf32, #tpu.memory_space<vmem>>, vector<8x32xf32>,
    %c3_i32 = arith.constant 3 : i32
    %c8_i32_36 = arith.constant 8 : i32
    %308 = arith.muli %c3_i32, %c8_i32_36 : i32
    %309 = tpu.assume_multiple %308, 8 : i32
    %310 = vector.extract_strided_slice %305 {offsets = [0, 0], sizes = [8, 1], strides = [1, 1]} : vector<8x32xf32> to vector<8x1xf32>
    %311 = vector.broadcast %310 : vector<8x1xf32> to vector<8x128xf32>
    %312 = arith.mulf %311, %36 : vector<8x128xf32>
    %313 = arith.addf %48, %312 : vector<8x128xf32>
    %314 = vector.extract_strided_slice %305 {offsets = [0, 1], sizes = [8, 1], strides = [1, 1]} : vector<8x32xf32> to vector<8x1xf32>
    %315 = vector.broadcast %314 : vector<8x1xf32> to vector<8x128xf32>
    %316 = arith.mulf %315, %39 : vector<8x128xf32>
    %317 = arith.addf %313, %316 : vector<8x128xf32>
    %318 = vector.extract_strided_slice %305 {offsets = [0, 2], sizes = [8, 1], strides = [1, 1]} : vector<8x32xf32> to vector<8x1xf32>
    %319 = vector.broadcast %318 : vector<8x1xf32> to vector<8x128xf32>
    %320 = arith.mulf %319, %42 : vector<8x128xf32>
    %321 = arith.addf %317, %320 : vector<8x128xf32>
    %322 = vector.extract_strided_slice %305 {offsets = [0, 3], sizes = [8, 1], strides = [1, 1]} : vector<8x32xf32> to vector<8x1xf32>
    %323 = vector.broadcast %322 : vector<8x1xf32> to vector<8x128xf32>
    %324 = arith.mulf %323, %45 : vector<8x128xf32>
    %325 = arith.addf %321, %324 : vector<8x128xf32>
    %326 = arith.index_cast %309 : i32 to index
    %c0_37 = arith.constant 0 : index
    %327 = vector.load %arg10[%326, %c0_37] : memref<64x128xf32, #tpu.memory_space<vmem>>, vector<8x128xf32>
    %328 = vector.extract_strided_slice %274 {offsets = [0, 0], sizes = [8, 1], strides = [1, 1]} : vector<8x32xf32> to vector<8x1xf32>
    %329 = vector.broadcast %328 : vector<8x1xf32> to vector<8x128xf32>
    %330 = arith.mulf %329, %12 : vector<8x128xf32>
    %331 = arith.addf %327, %330 : vector<8x128xf32>
    %332 = vector.extract_strided_slice %274 {offsets = [0, 1], sizes = [8, 1], strides = [1, 1]} : vector<8x32xf32> to vector<8x1xf32>
    %333 = vector.broadcast %332 : vector<8x1xf32> to vector<8x128xf32>
    %334 = arith.mulf %333, %15 : vector<8x128xf32>
    %335 = arith.addf %331, %334 : vector<8x128xf32>
    %336 = vector.extract_strided_slice %274 {offsets = [0, 2], sizes = [8, 1], strides = [1, 1]} : vector<8x32xf32> to vector<8x1xf32>
    %337 = vector.broadcast %336 : vector<8x1xf32> to vector<8x128xf32>
    %338 = arith.mulf %337, %18 : vector<8x128xf32>
    %339 = arith.addf %335, %338 : vector<8x128xf32>
    %340 = vector.extract_strided_slice %274 {offsets = [0, 3], sizes = [8, 1], strides = [1, 1]} : vector<8x32xf32> to vector<8x1xf32>
    %341 = vector.broadcast %340 : vector<8x1xf32> to vector<8x128xf32>
    %342 = arith.mulf %341, %21 : vector<8x128xf32>
    %343 = arith.addf %339, %342 : vector<8x128xf32>
    %344 = math.tanh %343 : vector<8x128xf32>
    %cst_38 = arith.constant 5.000000e-01 : f32
    %345 = vector.broadcast %cst_38 : f32 to vector<8x128xf32>
    %346 = arith.mulf %345, %344 : vector<8x128xf32>
    %cst_39 = arith.constant 5.000000e-01 : f32
    %347 = vector.broadcast %cst_39 : f32 to vector<8x128xf32>
    %348 = arith.addf %346, %347 : vector<8x128xf32>
    %349 = arith.select %54, %344, %348 : vector<8x128xi1>, vector<8x128xf32>
    %350 = vector.extract_strided_slice %349 {offsets = [0, 0], sizes = [8, 32], strides = [1, 1]} : vector<8x128xf32> to vector<8x32xf32>
    %351 = vector.extract_strided_slice %349 {offsets = [0, 32], sizes = [8, 32], strides = [1, 1]} : vector<8x128xf32> to vector<8x32xf32>
    %352 = vector.extract_strided_slice %349 {offsets = [0, 64], sizes = [8, 32], strides = [1, 1]} : vector<8x128xf32> to vector<8x32xf32>
    %353 = vector.extract_strided_slice %349 {offsets = [0, 96], sizes = [8, 32], strides = [1, 1]} : vector<8x128xf32> to vector<8x32xf32>
    %354 = arith.mulf %351, %272 : vector<8x32xf32>
    %355 = arith.mulf %350, %352 : vector<8x32xf32>
    %356 = arith.addf %354, %355 : vector<8x32xf32>
    %357 = math.tanh %356 : vector<8x32xf32>
    %358 = arith.mulf %353, %357 : vector<8x32xf32>
    %359 = vector.extract_strided_slice %358 {offsets = [0, 0], sizes = [8, 1], strides = [1, 1]} : vector<8x32xf32> to vector<8x1xf32>
    %360 = vector.broadcast %359 : vector<8x1xf32> to vector<8x128xf32>
    %361 = arith.mulf %360, %24 : vector<8x128xf32>
    %362 = arith.addf %325, %361 : vector<8x128xf32>
    %363 = vector.extract_strided_slice %358 {offsets = [0, 1], sizes = [8, 1], strides = [1, 1]} : vector<8x32xf32> to vector<8x1xf32>
    %364 = vector.broadcast %363 : vector<8x1xf32> to vector<8x128xf32>
    %365 = arith.mulf %364, %27 : vector<8x128xf32>
    %366 = arith.addf %362, %365 : vector<8x128xf32>
    %367 = vector.extract_strided_slice %358 {offsets = [0, 2], sizes = [8, 1], strides = [1, 1]} : vector<8x32xf32> to vector<8x1xf32>
    %368 = vector.broadcast %367 : vector<8x1xf32> to vector<8x128xf32>
    %369 = arith.mulf %368, %30 : vector<8x128xf32>
    %370 = arith.addf %366, %369 : vector<8x128xf32>
    %371 = vector.extract_strided_slice %358 {offsets = [0, 3], sizes = [8, 1], strides = [1, 1]} : vector<8x32xf32> to vector<8x1xf32>
    %372 = vector.broadcast %371 : vector<8x1xf32> to vector<8x128xf32>
    %373 = arith.mulf %372, %33 : vector<8x128xf32>
    %374 = arith.addf %370, %373 : vector<8x128xf32>
    %375 = math.tanh %374 : vector<8x128xf32>
    %cst_40 = arith.constant 5.000000e-01 : f32
    %376 = vector.broadcast %cst_40 : f32 to vector<8x128xf32>
    %377 = arith.mulf %376, %375 : vector<8x128xf32>
    %cst_41 = arith.constant 5.000000e-01 : f32
    %378 = vector.broadcast %cst_41 : f32 to vector<8x128xf32>
    %379 = arith.addf %377, %378 : vector<8x128xf32>
    %380 = arith.select %54, %375, %379 : vector<8x128xi1>, vector<8x128xf32>
    %381 = vector.extract_strided_slice %380 {offsets = [0, 0], sizes = [8, 32], strides = [1, 1]} : vector<8x128xf32> to vector<8x32xf32>
    %382 = vector.extract_strided_slice %380 {offsets = [0, 32], sizes = [8, 32], strides = [1, 1]} : vector<8x128xf32> to vector<8x32xf32>
    %383 = vector.extract_strided_slice %380 {offsets = [0, 64], sizes = [8, 32], strides = [1, 1]} : vector<8x128xf32> to vector<8x32xf32>
    %384 = vector.extract_strided_slice %380 {offsets = [0, 96], sizes = [8, 32], strides = [1, 1]} : vector<8x128xf32> to vector<8x32xf32>
    %385 = arith.mulf %382, %303 : vector<8x32xf32>
    %386 = arith.mulf %381, %383 : vector<8x32xf32>
    %387 = arith.addf %385, %386 : vector<8x32xf32>
    %388 = math.tanh %387 : vector<8x32xf32>
    %389 = arith.mulf %384, %388 : vector<8x32xf32>
    %390 = arith.index_cast %309 : i32 to index
    %c0_42 = arith.constant 0 : index
    %391 = vector.load %arg11[%390, %c0_42] : memref<64x32xf32, #tpu.memory_space<vmem>>, vector<8x32xf32>
    tpu.vector_store %arg11[%390, %c0_42], %389 {strides = array<i32>} : memref<64x32xf32, #tpu.memory_space<vmem>>, vector<8x32xf32>,
    %c4_i32 = arith.constant 4 : i32
    %c8_i32_43 = arith.constant 8 : i32
    %392 = arith.muli %c4_i32, %c8_i32_43 : i32
    %393 = tpu.assume_multiple %392, 8 : i32
    %394 = vector.extract_strided_slice %389 {offsets = [0, 0], sizes = [8, 1], strides = [1, 1]} : vector<8x32xf32> to vector<8x1xf32>
    %395 = vector.broadcast %394 : vector<8x1xf32> to vector<8x128xf32>
    %396 = arith.mulf %395, %36 : vector<8x128xf32>
    %397 = arith.addf %48, %396 : vector<8x128xf32>
    %398 = vector.extract_strided_slice %389 {offsets = [0, 1], sizes = [8, 1], strides = [1, 1]} : vector<8x32xf32> to vector<8x1xf32>
    %399 = vector.broadcast %398 : vector<8x1xf32> to vector<8x128xf32>
    %400 = arith.mulf %399, %39 : vector<8x128xf32>
    %401 = arith.addf %397, %400 : vector<8x128xf32>
    %402 = vector.extract_strided_slice %389 {offsets = [0, 2], sizes = [8, 1], strides = [1, 1]} : vector<8x32xf32> to vector<8x1xf32>
    %403 = vector.broadcast %402 : vector<8x1xf32> to vector<8x128xf32>
    %404 = arith.mulf %403, %42 : vector<8x128xf32>
    %405 = arith.addf %401, %404 : vector<8x128xf32>
    %406 = vector.extract_strided_slice %389 {offsets = [0, 3], sizes = [8, 1], strides = [1, 1]} : vector<8x32xf32> to vector<8x1xf32>
    %407 = vector.broadcast %406 : vector<8x1xf32> to vector<8x128xf32>
    %408 = arith.mulf %407, %45 : vector<8x128xf32>
    %409 = arith.addf %405, %408 : vector<8x128xf32>
    %410 = arith.index_cast %393 : i32 to index
    %c0_44 = arith.constant 0 : index
    %411 = vector.load %arg10[%410, %c0_44] : memref<64x128xf32, #tpu.memory_space<vmem>>, vector<8x128xf32>
    %412 = vector.extract_strided_slice %358 {offsets = [0, 0], sizes = [8, 1], strides = [1, 1]} : vector<8x32xf32> to vector<8x1xf32>
    %413 = vector.broadcast %412 : vector<8x1xf32> to vector<8x128xf32>
    %414 = arith.mulf %413, %12 : vector<8x128xf32>
    %415 = arith.addf %411, %414 : vector<8x128xf32>
    %416 = vector.extract_strided_slice %358 {offsets = [0, 1], sizes = [8, 1], strides = [1, 1]} : vector<8x32xf32> to vector<8x1xf32>
    %417 = vector.broadcast %416 : vector<8x1xf32> to vector<8x128xf32>
    %418 = arith.mulf %417, %15 : vector<8x128xf32>
    %419 = arith.addf %415, %418 : vector<8x128xf32>
    %420 = vector.extract_strided_slice %358 {offsets = [0, 2], sizes = [8, 1], strides = [1, 1]} : vector<8x32xf32> to vector<8x1xf32>
    %421 = vector.broadcast %420 : vector<8x1xf32> to vector<8x128xf32>
    %422 = arith.mulf %421, %18 : vector<8x128xf32>
    %423 = arith.addf %419, %422 : vector<8x128xf32>
    %424 = vector.extract_strided_slice %358 {offsets = [0, 3], sizes = [8, 1], strides = [1, 1]} : vector<8x32xf32> to vector<8x1xf32>
    %425 = vector.broadcast %424 : vector<8x1xf32> to vector<8x128xf32>
    %426 = arith.mulf %425, %21 : vector<8x128xf32>
    %427 = arith.addf %423, %426 : vector<8x128xf32>
    %428 = math.tanh %427 : vector<8x128xf32>
    %cst_45 = arith.constant 5.000000e-01 : f32
    %429 = vector.broadcast %cst_45 : f32 to vector<8x128xf32>
    %430 = arith.mulf %429, %428 : vector<8x128xf32>
    %cst_46 = arith.constant 5.000000e-01 : f32
    %431 = vector.broadcast %cst_46 : f32 to vector<8x128xf32>
    %432 = arith.addf %430, %431 : vector<8x128xf32>
    %433 = arith.select %54, %428, %432 : vector<8x128xi1>, vector<8x128xf32>
    %434 = vector.extract_strided_slice %433 {offsets = [0, 0], sizes = [8, 32], strides = [1, 1]} : vector<8x128xf32> to vector<8x32xf32>
    %435 = vector.extract_strided_slice %433 {offsets = [0, 32], sizes = [8, 32], strides = [1, 1]} : vector<8x128xf32> to vector<8x32xf32>
    %436 = vector.extract_strided_slice %433 {offsets = [0, 64], sizes = [8, 32], strides = [1, 1]} : vector<8x128xf32> to vector<8x32xf32>
    %437 = vector.extract_strided_slice %433 {offsets = [0, 96], sizes = [8, 32], strides = [1, 1]} : vector<8x128xf32> to vector<8x32xf32>
    %438 = arith.mulf %435, %356 : vector<8x32xf32>
    %439 = arith.mulf %434, %436 : vector<8x32xf32>
    %440 = arith.addf %438, %439 : vector<8x32xf32>
    %441 = math.tanh %440 : vector<8x32xf32>
    %442 = arith.mulf %437, %441 : vector<8x32xf32>
    %443 = vector.extract_strided_slice %442 {offsets = [0, 0], sizes = [8, 1], strides = [1, 1]} : vector<8x32xf32> to vector<8x1xf32>
    %444 = vector.broadcast %443 : vector<8x1xf32> to vector<8x128xf32>
    %445 = arith.mulf %444, %24 : vector<8x128xf32>
    %446 = arith.addf %409, %445 : vector<8x128xf32>
    %447 = vector.extract_strided_slice %442 {offsets = [0, 1], sizes = [8, 1], strides = [1, 1]} : vector<8x32xf32> to vector<8x1xf32>
    %448 = vector.broadcast %447 : vector<8x1xf32> to vector<8x128xf32>
    %449 = arith.mulf %448, %27 : vector<8x128xf32>
    %450 = arith.addf %446, %449 : vector<8x128xf32>
    %451 = vector.extract_strided_slice %442 {offsets = [0, 2], sizes = [8, 1], strides = [1, 1]} : vector<8x32xf32> to vector<8x1xf32>
    %452 = vector.broadcast %451 : vector<8x1xf32> to vector<8x128xf32>
    %453 = arith.mulf %452, %30 : vector<8x128xf32>
    %454 = arith.addf %450, %453 : vector<8x128xf32>
    %455 = vector.extract_strided_slice %442 {offsets = [0, 3], sizes = [8, 1], strides = [1, 1]} : vector<8x32xf32> to vector<8x1xf32>
    %456 = vector.broadcast %455 : vector<8x1xf32> to vector<8x128xf32>
    %457 = arith.mulf %456, %33 : vector<8x128xf32>
    %458 = arith.addf %454, %457 : vector<8x128xf32>
    %459 = math.tanh %458 : vector<8x128xf32>
    %cst_47 = arith.constant 5.000000e-01 : f32
    %460 = vector.broadcast %cst_47 : f32 to vector<8x128xf32>
    %461 = arith.mulf %460, %459 : vector<8x128xf32>
    %cst_48 = arith.constant 5.000000e-01 : f32
    %462 = vector.broadcast %cst_48 : f32 to vector<8x128xf32>
    %463 = arith.addf %461, %462 : vector<8x128xf32>
    %464 = arith.select %54, %459, %463 : vector<8x128xi1>, vector<8x128xf32>
    %465 = vector.extract_strided_slice %464 {offsets = [0, 0], sizes = [8, 32], strides = [1, 1]} : vector<8x128xf32> to vector<8x32xf32>
    %466 = vector.extract_strided_slice %464 {offsets = [0, 32], sizes = [8, 32], strides = [1, 1]} : vector<8x128xf32> to vector<8x32xf32>
    %467 = vector.extract_strided_slice %464 {offsets = [0, 64], sizes = [8, 32], strides = [1, 1]} : vector<8x128xf32> to vector<8x32xf32>
    %468 = vector.extract_strided_slice %464 {offsets = [0, 96], sizes = [8, 32], strides = [1, 1]} : vector<8x128xf32> to vector<8x32xf32>
    %469 = arith.mulf %466, %387 : vector<8x32xf32>
    %470 = arith.mulf %465, %467 : vector<8x32xf32>
    %471 = arith.addf %469, %470 : vector<8x32xf32>
    %472 = math.tanh %471 : vector<8x32xf32>
    %473 = arith.mulf %468, %472 : vector<8x32xf32>
    %474 = arith.index_cast %393 : i32 to index
    %c0_49 = arith.constant 0 : index
    %475 = vector.load %arg11[%474, %c0_49] : memref<64x32xf32, #tpu.memory_space<vmem>>, vector<8x32xf32>
    tpu.vector_store %arg11[%474, %c0_49], %473 {strides = array<i32>} : memref<64x32xf32, #tpu.memory_space<vmem>>, vector<8x32xf32>,
    %c5_i32 = arith.constant 5 : i32
    %c8_i32_50 = arith.constant 8 : i32
    %476 = arith.muli %c5_i32, %c8_i32_50 : i32
    %477 = tpu.assume_multiple %476, 8 : i32
    %478 = vector.extract_strided_slice %473 {offsets = [0, 0], sizes = [8, 1], strides = [1, 1]} : vector<8x32xf32> to vector<8x1xf32>
    %479 = vector.broadcast %478 : vector<8x1xf32> to vector<8x128xf32>
    %480 = arith.mulf %479, %36 : vector<8x128xf32>
    %481 = arith.addf %48, %480 : vector<8x128xf32>
    %482 = vector.extract_strided_slice %473 {offsets = [0, 1], sizes = [8, 1], strides = [1, 1]} : vector<8x32xf32> to vector<8x1xf32>
    %483 = vector.broadcast %482 : vector<8x1xf32> to vector<8x128xf32>
    %484 = arith.mulf %483, %39 : vector<8x128xf32>
    %485 = arith.addf %481, %484 : vector<8x128xf32>
    %486 = vector.extract_strided_slice %473 {offsets = [0, 2], sizes = [8, 1], strides = [1, 1]} : vector<8x32xf32> to vector<8x1xf32>
    %487 = vector.broadcast %486 : vector<8x1xf32> to vector<8x128xf32>
    %488 = arith.mulf %487, %42 : vector<8x128xf32>
    %489 = arith.addf %485, %488 : vector<8x128xf32>
    %490 = vector.extract_strided_slice %473 {offsets = [0, 3], sizes = [8, 1], strides = [1, 1]} : vector<8x32xf32> to vector<8x1xf32>
    %491 = vector.broadcast %490 : vector<8x1xf32> to vector<8x128xf32>
    %492 = arith.mulf %491, %45 : vector<8x128xf32>
    %493 = arith.addf %489, %492 : vector<8x128xf32>
    %494 = arith.index_cast %477 : i32 to index
    %c0_51 = arith.constant 0 : index
    %495 = vector.load %arg10[%494, %c0_51] : memref<64x128xf32, #tpu.memory_space<vmem>>, vector<8x128xf32>
    %496 = vector.extract_strided_slice %442 {offsets = [0, 0], sizes = [8, 1], strides = [1, 1]} : vector<8x32xf32> to vector<8x1xf32>
    %497 = vector.broadcast %496 : vector<8x1xf32> to vector<8x128xf32>
    %498 = arith.mulf %497, %12 : vector<8x128xf32>
    %499 = arith.addf %495, %498 : vector<8x128xf32>
    %500 = vector.extract_strided_slice %442 {offsets = [0, 1], sizes = [8, 1], strides = [1, 1]} : vector<8x32xf32> to vector<8x1xf32>
    %501 = vector.broadcast %500 : vector<8x1xf32> to vector<8x128xf32>
    %502 = arith.mulf %501, %15 : vector<8x128xf32>
    %503 = arith.addf %499, %502 : vector<8x128xf32>
    %504 = vector.extract_strided_slice %442 {offsets = [0, 2], sizes = [8, 1], strides = [1, 1]} : vector<8x32xf32> to vector<8x1xf32>
    %505 = vector.broadcast %504 : vector<8x1xf32> to vector<8x128xf32>
    %506 = arith.mulf %505, %18 : vector<8x128xf32>
    %507 = arith.addf %503, %506 : vector<8x128xf32>
    %508 = vector.extract_strided_slice %442 {offsets = [0, 3], sizes = [8, 1], strides = [1, 1]} : vector<8x32xf32> to vector<8x1xf32>
    %509 = vector.broadcast %508 : vector<8x1xf32> to vector<8x128xf32>
    %510 = arith.mulf %509, %21 : vector<8x128xf32>
    %511 = arith.addf %507, %510 : vector<8x128xf32>
    %512 = math.tanh %511 : vector<8x128xf32>
    %cst_52 = arith.constant 5.000000e-01 : f32
    %513 = vector.broadcast %cst_52 : f32 to vector<8x128xf32>
    %514 = arith.mulf %513, %512 : vector<8x128xf32>
    %cst_53 = arith.constant 5.000000e-01 : f32
    %515 = vector.broadcast %cst_53 : f32 to vector<8x128xf32>
    %516 = arith.addf %514, %515 : vector<8x128xf32>
    %517 = arith.select %54, %512, %516 : vector<8x128xi1>, vector<8x128xf32>
    %518 = vector.extract_strided_slice %517 {offsets = [0, 0], sizes = [8, 32], strides = [1, 1]} : vector<8x128xf32> to vector<8x32xf32>
    %519 = vector.extract_strided_slice %517 {offsets = [0, 32], sizes = [8, 32], strides = [1, 1]} : vector<8x128xf32> to vector<8x32xf32>
    %520 = vector.extract_strided_slice %517 {offsets = [0, 64], sizes = [8, 32], strides = [1, 1]} : vector<8x128xf32> to vector<8x32xf32>
    %521 = vector.extract_strided_slice %517 {offsets = [0, 96], sizes = [8, 32], strides = [1, 1]} : vector<8x128xf32> to vector<8x32xf32>
    %522 = arith.mulf %519, %440 : vector<8x32xf32>
    %523 = arith.mulf %518, %520 : vector<8x32xf32>
    %524 = arith.addf %522, %523 : vector<8x32xf32>
    %525 = math.tanh %524 : vector<8x32xf32>
    %526 = arith.mulf %521, %525 : vector<8x32xf32>
    %527 = vector.extract_strided_slice %526 {offsets = [0, 0], sizes = [8, 1], strides = [1, 1]} : vector<8x32xf32> to vector<8x1xf32>
    %528 = vector.broadcast %527 : vector<8x1xf32> to vector<8x128xf32>
    %529 = arith.mulf %528, %24 : vector<8x128xf32>
    %530 = arith.addf %493, %529 : vector<8x128xf32>
    %531 = vector.extract_strided_slice %526 {offsets = [0, 1], sizes = [8, 1], strides = [1, 1]} : vector<8x32xf32> to vector<8x1xf32>
    %532 = vector.broadcast %531 : vector<8x1xf32> to vector<8x128xf32>
    %533 = arith.mulf %532, %27 : vector<8x128xf32>
    %534 = arith.addf %530, %533 : vector<8x128xf32>
    %535 = vector.extract_strided_slice %526 {offsets = [0, 2], sizes = [8, 1], strides = [1, 1]} : vector<8x32xf32> to vector<8x1xf32>
    %536 = vector.broadcast %535 : vector<8x1xf32> to vector<8x128xf32>
    %537 = arith.mulf %536, %30 : vector<8x128xf32>
    %538 = arith.addf %534, %537 : vector<8x128xf32>
    %539 = vector.extract_strided_slice %526 {offsets = [0, 3], sizes = [8, 1], strides = [1, 1]} : vector<8x32xf32> to vector<8x1xf32>
    %540 = vector.broadcast %539 : vector<8x1xf32> to vector<8x128xf32>
    %541 = arith.mulf %540, %33 : vector<8x128xf32>
    %542 = arith.addf %538, %541 : vector<8x128xf32>
    %543 = math.tanh %542 : vector<8x128xf32>
    %cst_54 = arith.constant 5.000000e-01 : f32
    %544 = vector.broadcast %cst_54 : f32 to vector<8x128xf32>
    %545 = arith.mulf %544, %543 : vector<8x128xf32>
    %cst_55 = arith.constant 5.000000e-01 : f32
    %546 = vector.broadcast %cst_55 : f32 to vector<8x128xf32>
    %547 = arith.addf %545, %546 : vector<8x128xf32>
    %548 = arith.select %54, %543, %547 : vector<8x128xi1>, vector<8x128xf32>
    %549 = vector.extract_strided_slice %548 {offsets = [0, 0], sizes = [8, 32], strides = [1, 1]} : vector<8x128xf32> to vector<8x32xf32>
    %550 = vector.extract_strided_slice %548 {offsets = [0, 32], sizes = [8, 32], strides = [1, 1]} : vector<8x128xf32> to vector<8x32xf32>
    %551 = vector.extract_strided_slice %548 {offsets = [0, 64], sizes = [8, 32], strides = [1, 1]} : vector<8x128xf32> to vector<8x32xf32>
    %552 = vector.extract_strided_slice %548 {offsets = [0, 96], sizes = [8, 32], strides = [1, 1]} : vector<8x128xf32> to vector<8x32xf32>
    %553 = arith.mulf %550, %471 : vector<8x32xf32>
    %554 = arith.mulf %549, %551 : vector<8x32xf32>
    %555 = arith.addf %553, %554 : vector<8x32xf32>
    %556 = math.tanh %555 : vector<8x32xf32>
    %557 = arith.mulf %552, %556 : vector<8x32xf32>
    %558 = arith.index_cast %477 : i32 to index
    %c0_56 = arith.constant 0 : index
    %559 = vector.load %arg11[%558, %c0_56] : memref<64x32xf32, #tpu.memory_space<vmem>>, vector<8x32xf32>
    tpu.vector_store %arg11[%558, %c0_56], %557 {strides = array<i32>} : memref<64x32xf32, #tpu.memory_space<vmem>>, vector<8x32xf32>,
    %c6_i32 = arith.constant 6 : i32
    %c8_i32_57 = arith.constant 8 : i32
    %560 = arith.muli %c6_i32, %c8_i32_57 : i32
    %561 = tpu.assume_multiple %560, 8 : i32
    %562 = vector.extract_strided_slice %557 {offsets = [0, 0], sizes = [8, 1], strides = [1, 1]} : vector<8x32xf32> to vector<8x1xf32>
    %563 = vector.broadcast %562 : vector<8x1xf32> to vector<8x128xf32>
    %564 = arith.mulf %563, %36 : vector<8x128xf32>
    %565 = arith.addf %48, %564 : vector<8x128xf32>
    %566 = vector.extract_strided_slice %557 {offsets = [0, 1], sizes = [8, 1], strides = [1, 1]} : vector<8x32xf32> to vector<8x1xf32>
    %567 = vector.broadcast %566 : vector<8x1xf32> to vector<8x128xf32>
    %568 = arith.mulf %567, %39 : vector<8x128xf32>
    %569 = arith.addf %565, %568 : vector<8x128xf32>
    %570 = vector.extract_strided_slice %557 {offsets = [0, 2], sizes = [8, 1], strides = [1, 1]} : vector<8x32xf32> to vector<8x1xf32>
    %571 = vector.broadcast %570 : vector<8x1xf32> to vector<8x128xf32>
    %572 = arith.mulf %571, %42 : vector<8x128xf32>
    %573 = arith.addf %569, %572 : vector<8x128xf32>
    %574 = vector.extract_strided_slice %557 {offsets = [0, 3], sizes = [8, 1], strides = [1, 1]} : vector<8x32xf32> to vector<8x1xf32>
    %575 = vector.broadcast %574 : vector<8x1xf32> to vector<8x128xf32>
    %576 = arith.mulf %575, %45 : vector<8x128xf32>
    %577 = arith.addf %573, %576 : vector<8x128xf32>
    %578 = arith.index_cast %561 : i32 to index
    %c0_58 = arith.constant 0 : index
    %579 = vector.load %arg10[%578, %c0_58] : memref<64x128xf32, #tpu.memory_space<vmem>>, vector<8x128xf32>
    %580 = vector.extract_strided_slice %526 {offsets = [0, 0], sizes = [8, 1], strides = [1, 1]} : vector<8x32xf32> to vector<8x1xf32>
    %581 = vector.broadcast %580 : vector<8x1xf32> to vector<8x128xf32>
    %582 = arith.mulf %581, %12 : vector<8x128xf32>
    %583 = arith.addf %579, %582 : vector<8x128xf32>
    %584 = vector.extract_strided_slice %526 {offsets = [0, 1], sizes = [8, 1], strides = [1, 1]} : vector<8x32xf32> to vector<8x1xf32>
    %585 = vector.broadcast %584 : vector<8x1xf32> to vector<8x128xf32>
    %586 = arith.mulf %585, %15 : vector<8x128xf32>
    %587 = arith.addf %583, %586 : vector<8x128xf32>
    %588 = vector.extract_strided_slice %526 {offsets = [0, 2], sizes = [8, 1], strides = [1, 1]} : vector<8x32xf32> to vector<8x1xf32>
    %589 = vector.broadcast %588 : vector<8x1xf32> to vector<8x128xf32>
    %590 = arith.mulf %589, %18 : vector<8x128xf32>
    %591 = arith.addf %587, %590 : vector<8x128xf32>
    %592 = vector.extract_strided_slice %526 {offsets = [0, 3], sizes = [8, 1], strides = [1, 1]} : vector<8x32xf32> to vector<8x1xf32>
    %593 = vector.broadcast %592 : vector<8x1xf32> to vector<8x128xf32>
    %594 = arith.mulf %593, %21 : vector<8x128xf32>
    %595 = arith.addf %591, %594 : vector<8x128xf32>
    %596 = math.tanh %595 : vector<8x128xf32>
    %cst_59 = arith.constant 5.000000e-01 : f32
    %597 = vector.broadcast %cst_59 : f32 to vector<8x128xf32>
    %598 = arith.mulf %597, %596 : vector<8x128xf32>
    %cst_60 = arith.constant 5.000000e-01 : f32
    %599 = vector.broadcast %cst_60 : f32 to vector<8x128xf32>
    %600 = arith.addf %598, %599 : vector<8x128xf32>
    %601 = arith.select %54, %596, %600 : vector<8x128xi1>, vector<8x128xf32>
    %602 = vector.extract_strided_slice %601 {offsets = [0, 0], sizes = [8, 32], strides = [1, 1]} : vector<8x128xf32> to vector<8x32xf32>
    %603 = vector.extract_strided_slice %601 {offsets = [0, 32], sizes = [8, 32], strides = [1, 1]} : vector<8x128xf32> to vector<8x32xf32>
    %604 = vector.extract_strided_slice %601 {offsets = [0, 64], sizes = [8, 32], strides = [1, 1]} : vector<8x128xf32> to vector<8x32xf32>
    %605 = vector.extract_strided_slice %601 {offsets = [0, 96], sizes = [8, 32], strides = [1, 1]} : vector<8x128xf32> to vector<8x32xf32>
    %606 = arith.mulf %603, %524 : vector<8x32xf32>
    %607 = arith.mulf %602, %604 : vector<8x32xf32>
    %608 = arith.addf %606, %607 : vector<8x32xf32>
    %609 = math.tanh %608 : vector<8x32xf32>
    %610 = arith.mulf %605, %609 : vector<8x32xf32>
    %611 = vector.extract_strided_slice %610 {offsets = [0, 0], sizes = [8, 1], strides = [1, 1]} : vector<8x32xf32> to vector<8x1xf32>
    %612 = vector.broadcast %611 : vector<8x1xf32> to vector<8x128xf32>
    %613 = arith.mulf %612, %24 : vector<8x128xf32>
    %614 = arith.addf %577, %613 : vector<8x128xf32>
    %615 = vector.extract_strided_slice %610 {offsets = [0, 1], sizes = [8, 1], strides = [1, 1]} : vector<8x32xf32> to vector<8x1xf32>
    %616 = vector.broadcast %615 : vector<8x1xf32> to vector<8x128xf32>
    %617 = arith.mulf %616, %27 : vector<8x128xf32>
    %618 = arith.addf %614, %617 : vector<8x128xf32>
    %619 = vector.extract_strided_slice %610 {offsets = [0, 2], sizes = [8, 1], strides = [1, 1]} : vector<8x32xf32> to vector<8x1xf32>
    %620 = vector.broadcast %619 : vector<8x1xf32> to vector<8x128xf32>
    %621 = arith.mulf %620, %30 : vector<8x128xf32>
    %622 = arith.addf %618, %621 : vector<8x128xf32>
    %623 = vector.extract_strided_slice %610 {offsets = [0, 3], sizes = [8, 1], strides = [1, 1]} : vector<8x32xf32> to vector<8x1xf32>
    %624 = vector.broadcast %623 : vector<8x1xf32> to vector<8x128xf32>
    %625 = arith.mulf %624, %33 : vector<8x128xf32>
    %626 = arith.addf %622, %625 : vector<8x128xf32>
    %627 = math.tanh %626 : vector<8x128xf32>
    %cst_61 = arith.constant 5.000000e-01 : f32
    %628 = vector.broadcast %cst_61 : f32 to vector<8x128xf32>
    %629 = arith.mulf %628, %627 : vector<8x128xf32>
    %cst_62 = arith.constant 5.000000e-01 : f32
    %630 = vector.broadcast %cst_62 : f32 to vector<8x128xf32>
    %631 = arith.addf %629, %630 : vector<8x128xf32>
    %632 = arith.select %54, %627, %631 : vector<8x128xi1>, vector<8x128xf32>
    %633 = vector.extract_strided_slice %632 {offsets = [0, 0], sizes = [8, 32], strides = [1, 1]} : vector<8x128xf32> to vector<8x32xf32>
    %634 = vector.extract_strided_slice %632 {offsets = [0, 32], sizes = [8, 32], strides = [1, 1]} : vector<8x128xf32> to vector<8x32xf32>
    %635 = vector.extract_strided_slice %632 {offsets = [0, 64], sizes = [8, 32], strides = [1, 1]} : vector<8x128xf32> to vector<8x32xf32>
    %636 = vector.extract_strided_slice %632 {offsets = [0, 96], sizes = [8, 32], strides = [1, 1]} : vector<8x128xf32> to vector<8x32xf32>
    %637 = arith.mulf %634, %555 : vector<8x32xf32>
    %638 = arith.mulf %633, %635 : vector<8x32xf32>
    %639 = arith.addf %637, %638 : vector<8x32xf32>
    %640 = math.tanh %639 : vector<8x32xf32>
    %641 = arith.mulf %636, %640 : vector<8x32xf32>
    %642 = arith.index_cast %561 : i32 to index
    %c0_63 = arith.constant 0 : index
    %643 = vector.load %arg11[%642, %c0_63] : memref<64x32xf32, #tpu.memory_space<vmem>>, vector<8x32xf32>
    tpu.vector_store %arg11[%642, %c0_63], %641 {strides = array<i32>} : memref<64x32xf32, #tpu.memory_space<vmem>>, vector<8x32xf32>,
    %c7_i32 = arith.constant 7 : i32
    %c8_i32_64 = arith.constant 8 : i32
    %644 = arith.muli %c7_i32, %c8_i32_64 : i32
    %645 = tpu.assume_multiple %644, 8 : i32
    %646 = vector.extract_strided_slice %641 {offsets = [0, 0], sizes = [8, 1], strides = [1, 1]} : vector<8x32xf32> to vector<8x1xf32>
    %647 = vector.broadcast %646 : vector<8x1xf32> to vector<8x128xf32>
    %648 = arith.mulf %647, %36 : vector<8x128xf32>
    %649 = arith.addf %48, %648 : vector<8x128xf32>
    %650 = vector.extract_strided_slice %641 {offsets = [0, 1], sizes = [8, 1], strides = [1, 1]} : vector<8x32xf32> to vector<8x1xf32>
    %651 = vector.broadcast %650 : vector<8x1xf32> to vector<8x128xf32>
    %652 = arith.mulf %651, %39 : vector<8x128xf32>
    %653 = arith.addf %649, %652 : vector<8x128xf32>
    %654 = vector.extract_strided_slice %641 {offsets = [0, 2], sizes = [8, 1], strides = [1, 1]} : vector<8x32xf32> to vector<8x1xf32>
    %655 = vector.broadcast %654 : vector<8x1xf32> to vector<8x128xf32>
    %656 = arith.mulf %655, %42 : vector<8x128xf32>
    %657 = arith.addf %653, %656 : vector<8x128xf32>
    %658 = vector.extract_strided_slice %641 {offsets = [0, 3], sizes = [8, 1], strides = [1, 1]} : vector<8x32xf32> to vector<8x1xf32>
    %659 = vector.broadcast %658 : vector<8x1xf32> to vector<8x128xf32>
    %660 = arith.mulf %659, %45 : vector<8x128xf32>
    %661 = arith.addf %657, %660 : vector<8x128xf32>
    %662 = arith.index_cast %645 : i32 to index
    %c0_65 = arith.constant 0 : index
    %663 = vector.load %arg10[%662, %c0_65] : memref<64x128xf32, #tpu.memory_space<vmem>>, vector<8x128xf32>
    %664 = vector.extract_strided_slice %610 {offsets = [0, 0], sizes = [8, 1], strides = [1, 1]} : vector<8x32xf32> to vector<8x1xf32>
    %665 = vector.broadcast %664 : vector<8x1xf32> to vector<8x128xf32>
    %666 = arith.mulf %665, %12 : vector<8x128xf32>
    %667 = arith.addf %663, %666 : vector<8x128xf32>
    %668 = vector.extract_strided_slice %610 {offsets = [0, 1], sizes = [8, 1], strides = [1, 1]} : vector<8x32xf32> to vector<8x1xf32>
    %669 = vector.broadcast %668 : vector<8x1xf32> to vector<8x128xf32>
    %670 = arith.mulf %669, %15 : vector<8x128xf32>
    %671 = arith.addf %667, %670 : vector<8x128xf32>
    %672 = vector.extract_strided_slice %610 {offsets = [0, 2], sizes = [8, 1], strides = [1, 1]} : vector<8x32xf32> to vector<8x1xf32>
    %673 = vector.broadcast %672 : vector<8x1xf32> to vector<8x128xf32>
    %674 = arith.mulf %673, %18 : vector<8x128xf32>
    %675 = arith.addf %671, %674 : vector<8x128xf32>
    %676 = vector.extract_strided_slice %610 {offsets = [0, 3], sizes = [8, 1], strides = [1, 1]} : vector<8x32xf32> to vector<8x1xf32>
    %677 = vector.broadcast %676 : vector<8x1xf32> to vector<8x128xf32>
    %678 = arith.mulf %677, %21 : vector<8x128xf32>
    %679 = arith.addf %675, %678 : vector<8x128xf32>
    %680 = math.tanh %679 : vector<8x128xf32>
    %cst_66 = arith.constant 5.000000e-01 : f32
    %681 = vector.broadcast %cst_66 : f32 to vector<8x128xf32>
    %682 = arith.mulf %681, %680 : vector<8x128xf32>
    %cst_67 = arith.constant 5.000000e-01 : f32
    %683 = vector.broadcast %cst_67 : f32 to vector<8x128xf32>
    %684 = arith.addf %682, %683 : vector<8x128xf32>
    %685 = arith.select %54, %680, %684 : vector<8x128xi1>, vector<8x128xf32>
    %686 = vector.extract_strided_slice %685 {offsets = [0, 0], sizes = [8, 32], strides = [1, 1]} : vector<8x128xf32> to vector<8x32xf32>
    %687 = vector.extract_strided_slice %685 {offsets = [0, 32], sizes = [8, 32], strides = [1, 1]} : vector<8x128xf32> to vector<8x32xf32>
    %688 = vector.extract_strided_slice %685 {offsets = [0, 64], sizes = [8, 32], strides = [1, 1]} : vector<8x128xf32> to vector<8x32xf32>
    %689 = vector.extract_strided_slice %685 {offsets = [0, 96], sizes = [8, 32], strides = [1, 1]} : vector<8x128xf32> to vector<8x32xf32>
    %690 = arith.mulf %687, %608 : vector<8x32xf32>
    %691 = arith.mulf %686, %688 : vector<8x32xf32>
    %692 = arith.addf %690, %691 : vector<8x32xf32>
    %693 = math.tanh %692 : vector<8x32xf32>
    %694 = arith.mulf %689, %693 : vector<8x32xf32>
    %695 = vector.extract_strided_slice %694 {offsets = [0, 0], sizes = [8, 1], strides = [1, 1]} : vector<8x32xf32> to vector<8x1xf32>
    %696 = vector.broadcast %695 : vector<8x1xf32> to vector<8x128xf32>
    %697 = arith.mulf %696, %24 : vector<8x128xf32>
    %698 = arith.addf %661, %697 : vector<8x128xf32>
    %699 = vector.extract_strided_slice %694 {offsets = [0, 1], sizes = [8, 1], strides = [1, 1]} : vector<8x32xf32> to vector<8x1xf32>
    %700 = vector.broadcast %699 : vector<8x1xf32> to vector<8x128xf32>
    %701 = arith.mulf %700, %27 : vector<8x128xf32>
    %702 = arith.addf %698, %701 : vector<8x128xf32>
    %703 = vector.extract_strided_slice %694 {offsets = [0, 2], sizes = [8, 1], strides = [1, 1]} : vector<8x32xf32> to vector<8x1xf32>
    %704 = vector.broadcast %703 : vector<8x1xf32> to vector<8x128xf32>
    %705 = arith.mulf %704, %30 : vector<8x128xf32>
    %706 = arith.addf %702, %705 : vector<8x128xf32>
    %707 = vector.extract_strided_slice %694 {offsets = [0, 3], sizes = [8, 1], strides = [1, 1]} : vector<8x32xf32> to vector<8x1xf32>
    %708 = vector.broadcast %707 : vector<8x1xf32> to vector<8x128xf32>
    %709 = arith.mulf %708, %33 : vector<8x128xf32>
    %710 = arith.addf %706, %709 : vector<8x128xf32>
    %711 = math.tanh %710 : vector<8x128xf32>
    %cst_68 = arith.constant 5.000000e-01 : f32
    %712 = vector.broadcast %cst_68 : f32 to vector<8x128xf32>
    %713 = arith.mulf %712, %711 : vector<8x128xf32>
    %cst_69 = arith.constant 5.000000e-01 : f32
    %714 = vector.broadcast %cst_69 : f32 to vector<8x128xf32>
    %715 = arith.addf %713, %714 : vector<8x128xf32>
    %716 = arith.select %54, %711, %715 : vector<8x128xi1>, vector<8x128xf32>
    %717 = vector.extract_strided_slice %716 {offsets = [0, 0], sizes = [8, 32], strides = [1, 1]} : vector<8x128xf32> to vector<8x32xf32>
    %718 = vector.extract_strided_slice %716 {offsets = [0, 32], sizes = [8, 32], strides = [1, 1]} : vector<8x128xf32> to vector<8x32xf32>
    %719 = vector.extract_strided_slice %716 {offsets = [0, 64], sizes = [8, 32], strides = [1, 1]} : vector<8x128xf32> to vector<8x32xf32>
    %720 = vector.extract_strided_slice %716 {offsets = [0, 96], sizes = [8, 32], strides = [1, 1]} : vector<8x128xf32> to vector<8x32xf32>
    %721 = arith.mulf %718, %639 : vector<8x32xf32>
    %722 = arith.mulf %717, %719 : vector<8x32xf32>
    %723 = arith.addf %721, %722 : vector<8x32xf32>
    %724 = math.tanh %723 : vector<8x32xf32>
    %725 = arith.mulf %720, %724 : vector<8x32xf32>
    %726 = arith.index_cast %645 : i32 to index
    %c0_70 = arith.constant 0 : index
    %727 = vector.load %arg11[%726, %c0_70] : memref<64x32xf32, #tpu.memory_space<vmem>>, vector<8x32xf32>
    tpu.vector_store %arg11[%726, %c0_70], %725 {strides = array<i32>} : memref<64x32xf32, #tpu.memory_space<vmem>>, vector<8x32xf32>,
    %c8_i32_71 = arith.constant 8 : i32
    %c0_72 = arith.constant 0 : index
    %c0_73 = arith.constant 0 : index
    %728 = vector.load %arg11[%c0_72, %c0_73] : memref<64x32xf32, #tpu.memory_space<vmem>>, vector<64x32xf32>
    %c0_74 = arith.constant 0 : index
    %c0_75 = arith.constant 0 : index
    %729 = vector.load %arg7[%c0_74, %c0_75] : memref<32x128xf32, #tpu.memory_space<vmem>>, vector<32x128xf32>
    %cst_76 = arith.constant dense<0.000000e+00> : vector<64x128xf32>
    %730 = tpu.matmul %728, %729, %cst_76 {dimension_numbers = #tpu.dot_dimension_numbers<[1], [0], [0], [1], [0, 0, 1, 1], [], []>} : vector<64x32xf32>, vector<32x128xf32>, vector<64x128xf32> -> vector<64x128xf32>
    %c0_77 = arith.constant 0 : index
    %c0_78 = arith.constant 0 : index
    %731 = vector.load %arg8[%c0_77, %c0_78] : memref<1x128xf32, #tpu.memory_space<vmem>>, vector<1x128xf32>
    %732 = vector.broadcast %731 : vector<1x128xf32> to vector<64x128xf32>
    %733 = arith.addf %730, %732 : vector<64x128xf32>
    %c0_79 = arith.constant 0 : index
    %c0_80 = arith.constant 0 : index
    %734 = vector.load %arg9[%c0_79, %c0_80] : memref<64x128xf32, #tpu.memory_space<vmem>>, vector<64x128xf32>
    tpu.vector_store %arg9[%c0_79, %c0_80], %733 {strides = array<i32>} : memref<64x128xf32, #tpu.memory_space<vmem>>, vector<64x128xf32>,
    return
  }
}

</mosaic_0001>

<llo_original>
// kernel: tpu_custom_call.1
$region0: #{tpu_custom_call.1}
  #allocation0 [shape = 'u32[]', space=smem, size = 0x4, offset = 0x4, fixed_abs, tag = 'smem constant byte address 0x4 - core index']
  #allocation1 [shape = 'u32[72,128]{1,0:T(1,128)}', space=vmem, size = 0x9000, scoped, tag = 'internal scratch']
  #allocation2 [shape = 'f32[64,128]{1,0:T(8,128)}', space=vmem, size = 0x8000, scoped, tag = 'scratch operand']
  #allocation3 [shape = 'f32[64,32]{1,0:T(8,128)}', space=vmem, size = 0x8000, scoped, tag = 'scratch operand']
  %s0 = inlined_call_operand.hbm [shape: f32[64,128], index: 0, kind: input, shape index: {}]
  %s1 = inlined_call_operand.hbm [shape: f32[128,128], index: 1, kind: input, shape index: {}]
  %s2 = inlined_call_operand.vmem [shape: f32[1,128], index: 2, kind: input, shape index: {}]
  %s3 = inlined_call_operand.hbm [shape: f32[8,128], index: 3, kind: input, shape index: {}]
  %s4 = inlined_call_operand.hbm [shape: f32[8,128], index: 4, kind: input, shape index: {}]
  %s5 = inlined_call_operand.hbm [shape: f32[8,128], index: 5, kind: input, shape index: {}]
  %s6 = inlined_call_operand.vmem [shape: f32[1,128], index: 6, kind: input, shape index: {}]
  %s7 = inlined_call_operand.hbm [shape: f32[32,128], index: 7, kind: input, shape index: {}]
  %s8 = inlined_call_operand.vmem [shape: f32[1,128], index: 8, kind: input, shape index: {}]
  %s9 = inlined_call_operand.hbm [shape: f32[64,128], index: 9, kind: output, shape index: {}]
  %s10 = sld [smem:[#allocation0]]
  $region70: #{tpu_custom_call.1} parent=0
    _
  %s12 = ssub.s32 1, %s10
  %s13 = scalar_select 0, %s12, %s10
  $region1: #{tpu_custom_call.1} parent=0
    #allocation4 [shape = 'u8[32768]{0}', space=vmem, size = 0x8000, scoped, tag = 'input window, operand 0, single buffered']
    #allocation5 [shape = 's32[1]{0}', space=sflag, size = 0x4, scoped, tag = 'scoped memory for tpu_custom_call.1']
    #allocation6 [shape = 's32[1]{0}', space=sflag, size = 0x4, scoped, tag = 'scoped memory for tpu_custom_call.1']
    #allocation7 [shape = 'u8[65536]{0}', space=vmem, size = 0x10000, scoped, tag = 'input window, operand 1, single buffered']
    #allocation8 [shape = 's32[1]{0}', space=sflag, size = 0x4, scoped, tag = 'scoped memory for tpu_custom_call.1']
    #allocation9 [shape = 'u8[4096]{0}', space=vmem, size = 0x1000, scoped, tag = 'input window, operand 3, single buffered']
    #allocation10 [shape = 'u8[4096]{0}', space=vmem, size = 0x1000, scoped, tag = 'input window, operand 4, single buffered']
    #allocation11 [shape = 's32[1]{0}', space=sflag, size = 0x4, scoped, tag = 'scoped memory for tpu_custom_call.1']
    #allocation12 [shape = 'u8[4096]{0}', space=vmem, size = 0x1000, scoped, tag = 'input window, operand 5, single buffered']
    #allocation13 [shape = 'u8[16384]{0}', space=vmem, size = 0x4000, scoped, tag = 'input window, operand 7, single buffered']
    #allocation14 [shape = 's32[1]{0}', space=sflag, size = 0x4, scoped, tag = 'scoped memory for tpu_custom_call.1']
    #allocation15 [shape = 'u8[32768]{0}', space=vmem, size = 0x8000, scoped, tag = 'output window, operand 0, single buffered']
    %14 = vsyncpa [#allocation5], 0
    %15 = vsyncpa [#allocation8], 0
    %16 = vsyncpa [#allocation11], 0
    %17 = vsyncpa [#allocation14], 0
    %18 = vsyncpa [#allocation6], 0
    // Predicated region
    $region2: #{tpu_custom_call.1} parent=1 // pred_check
      _
    $region3: #{tpu_custom_call.1} parent=1 // pred_check_branch
      %20 = sbr.rel (0) target = $region5
    $region4: #{tpu_custom_call.1} parent=1 // pred_region
      %22 = vsyncadd [#allocation5], 0
      %s23 = sshll.u32 %s0, 4
      %s24 = int_to_ptr.hbm [resolvable:$true] %s23
      %s25 = sshll.u32 [#allocation4], 4
      %s26 = int_to_ptr.vmem [resolvable:$true] %s25
      %31 = dma.hbm_to_vmem [thread:$0]  %s24, 1024, %s26, [#allocation5], 128, 128, 8
    $region5: #{tpu_custom_call.1} parent=1 // pred_fallthru
      _
    // Predicated region
    $region6: #{tpu_custom_call.1} parent=1 // pred_check
      _
    $region7: #{tpu_custom_call.1} parent=1 // pred_check_branch
      %33 = sbr.rel (0) target = $region9
    $region8: #{tpu_custom_call.1} parent=1 // pred_region
      %35 = vsyncadd [#allocation8], 0
      %s36 = sshll.u32 %s1, 4
      %s37 = int_to_ptr.hbm [resolvable:$true] %s36
      %s38 = sshll.u32 [#allocation7], 4
      %s39 = int_to_ptr.vmem [resolvable:$true] %s38
      %44 = dma.hbm_to_vmem [thread:$0]  %s37, 2048, %s39, [#allocation8], 128, 128, 8
    $region9: #{tpu_custom_call.1} parent=1 // pred_fallthru
      _
    // Predicated region
    $region10: #{tpu_custom_call.1} parent=1 // pred_check
      _
    $region11: #{tpu_custom_call.1} parent=1 // pred_check_branch
      %46 = sbr.rel (0) target = $region13
    $region12: #{tpu_custom_call.1} parent=1 // pred_region
      _
    $region13: #{tpu_custom_call.1} parent=1 // pred_fallthru
      _
    // Predicated region
    $region14: #{tpu_custom_call.1} parent=1 // pred_check
      _
    $region15: #{tpu_custom_call.1} parent=1 // pred_check_branch
      %48 = sbr.rel (0) target = $region17
    $region16: #{tpu_custom_call.1} parent=1 // pred_region
      %50 = vsyncadd [#allocation8], 0
      %s52 = sshll.u32 %s3, 4
      %s53 = int_to_ptr.hbm [resolvable:$true] %s52
      %s54 = sshll.u32 [#allocation9], 4
      %s55 = int_to_ptr.vmem [resolvable:$true] %s54
      %57 = dma.hbm_to_vmem [thread:$0]  %s53, 128, %s55, [#allocation8]
    $region17: #{tpu_custom_call.1} parent=1 // pred_fallthru
      _
    // Predicated region
    $region18: #{tpu_custom_call.1} parent=1 // pred_check
      _
    $region19: #{tpu_custom_call.1} parent=1 // pred_check_branch
      %59 = sbr.rel (0) target = $region21
    $region20: #{tpu_custom_call.1} parent=1 // pred_region
      %61 = vsyncadd [#allocation11], 0
      %s63 = sshll.u32 %s4, 4
      %s64 = int_to_ptr.hbm [resolvable:$true] %s63
      %s65 = sshll.u32 [#allocation10], 4
      %s66 = int_to_ptr.vmem [resolvable:$true] %s65
      %68 = dma.hbm_to_vmem [thread:$0]  %s64, 128, %s66, [#allocation11]
    $region21: #{tpu_custom_call.1} parent=1 // pred_fallthru
      _
    // Predicated region
    $region22: #{tpu_custom_call.1} parent=1 // pred_check
      _
    $region23: #{tpu_custom_call.1} parent=1 // pred_check_branch
      %70 = sbr.rel (0) target = $region25
    $region24: #{tpu_custom_call.1} parent=1 // pred_region
      %72 = vsyncadd [#allocation11], 0
      %s74 = sshll.u32 %s5, 4
      %s75 = int_to_ptr.hbm [resolvable:$true] %s74
      %s76 = sshll.u32 [#allocation12], 4
      %s77 = int_to_ptr.vmem [resolvable:$true] %s76
      %79 = dma.hbm_to_vmem [thread:$0]  %s75, 128, %s77, [#allocation11]
    $region25: #{tpu_custom_call.1} parent=1 // pred_fallthru
      _
    // Predicated region
    $region26: #{tpu_custom_call.1} parent=1 // pred_check
      _
    $region27: #{tpu_custom_call.1} parent=1 // pred_check_branch
      %81 = sbr.rel (0) target = $region29
    $region28: #{tpu_custom_call.1} parent=1 // pred_region
      _
    $region29: #{tpu_custom_call.1} parent=1 // pred_fallthru
      _
    // Predicated region
    $region30: #{tpu_custom_call.1} parent=1 // pred_check
      _
    $region31: #{tpu_custom_call.1} parent=1 // pred_check_branch
      %83 = sbr.rel (0) target = $region33
    $region32: #{tpu_custom_call.1} parent=1 // pred_region
      %85 = vsyncadd [#allocation14], 0
      %s86 = sshll.u32 %s7, 4
      %s87 = int_to_ptr.hbm [resolvable:$true] %s86
      %s88 = sshll.u32 [#allocation13], 4
      %s89 = int_to_ptr.vmem [resolvable:$true] %s88
      %94 = dma.hbm_to_vmem [thread:$0]  %s87, 512, %s89, [#allocation14], 128, 128, 8
    $region33: #{tpu_custom_call.1} parent=1 // pred_fallthru
      _
    // Predicated region
    $region34: #{tpu_custom_call.1} parent=1 // pred_check
      _
    $region35: #{tpu_custom_call.1} parent=1 // pred_check_branch
      %96 = sbr.rel (0) target = $region37
    $region36: #{tpu_custom_call.1} parent=1 // pred_region
      _
    $region37: #{tpu_custom_call.1} parent=1 // pred_fallthru
      _
    // Predicated region
    $region38: #{tpu_custom_call.1} parent=1 // pred_check
      _
    $region39: #{tpu_custom_call.1} parent=1 // pred_check_branch
      %98 = sbr.rel (0) target = $region41
    $region40: #{tpu_custom_call.1} parent=1 // pred_region
      %100 = dma.done [#allocation5], 1024
    $region41: #{tpu_custom_call.1} parent=1 // pred_fallthru
      _
    // Predicated region
    $region42: #{tpu_custom_call.1} parent=1 // pred_check
      _
    $region43: #{tpu_custom_call.1} parent=1 // pred_check_branch
      %102 = sbr.rel (0) target = $region45
    $region44: #{tpu_custom_call.1} parent=1 // pred_region
      %104 = dma.done [#allocation8], 2048
    $region45: #{tpu_custom_call.1} parent=1 // pred_fallthru
      _
    // Predicated region
    $region46: #{tpu_custom_call.1} parent=1 // pred_check
      _
    $region47: #{tpu_custom_call.1} parent=1 // pred_check_branch
      %106 = sbr.rel (0) target = $region49
    $region48: #{tpu_custom_call.1} parent=1 // pred_region
      %108 = dma.done [#allocation8], 128
    $region49: #{tpu_custom_call.1} parent=1 // pred_fallthru
      _
    // Predicated region
    $region50: #{tpu_custom_call.1} parent=1 // pred_check
      _
    $region51: #{tpu_custom_call.1} parent=1 // pred_check_branch
      %110 = sbr.rel (0) target = $region53
    $region52: #{tpu_custom_call.1} parent=1 // pred_region
      %112 = dma.done [#allocation11], 128
    $region53: #{tpu_custom_call.1} parent=1 // pred_fallthru
      _
    // Predicated region
    $region54: #{tpu_custom_call.1} parent=1 // pred_check
      _
    $region55: #{tpu_custom_call.1} parent=1 // pred_check_branch
      %114 = sbr.rel (0) target = $region57
    $region56: #{tpu_custom_call.1} parent=1 // pred_region
      %116 = dma.done [#allocation11], 128
    $region57: #{tpu_custom_call.1} parent=1 // pred_fallthru
      _
    // Predicated region
    $region58: #{tpu_custom_call.1} parent=1 // pred_check
      _
    $region59: #{tpu_custom_call.1} parent=1 // pred_check_branch
      %118 = sbr.rel (0) target = $region61
    $region60: #{tpu_custom_call.1} parent=1 // pred_region
      %120 = dma.done [#allocation14], 512
    $region61: #{tpu_custom_call.1} parent=1 // pred_fallthru
      _
    %v121 = vld [vmem:[#allocation4] sm:$0xff]
    %v122 = vld [vmem:[#allocation4 + $0x8] sm:$0xff]
    %v123 = vld [vmem:[#allocation4 + $0x10] sm:$0xff]
    %v124 = vld [vmem:[#allocation4 + $0x18] sm:$0xff]
    %v125 = vld [vmem:[#allocation4 + $0x20] sm:$0xff]
    %v126 = vld [vmem:[#allocation4 + $0x28] sm:$0xff]
    %v127 = vld [vmem:[#allocation4 + $0x30] sm:$0xff]
    %v128 = vld [vmem:[#allocation4 + $0x38] sm:$0xff]
    %v129 = vld [vmem:[#allocation7] sm:$0xff]
    %v130 = vld [vmem:[#allocation7 + $0x8] sm:$0xff]
    %v131 = vld [vmem:[#allocation7 + $0x10] sm:$0xff]
    %v132 = vld [vmem:[#allocation7 + $0x18] sm:$0xff]
    %v133 = vld [vmem:[#allocation7 + $0x20] sm:$0xff]
    %v134 = vld [vmem:[#allocation7 + $0x28] sm:$0xff]
    %v135 = vld [vmem:[#allocation7 + $0x30] sm:$0xff]
    %v136 = vld [vmem:[#allocation7 + $0x38] sm:$0xff]
    %v137 = vld [vmem:[#allocation7 + $0x40] sm:$0xff]
    %v138 = vld [vmem:[#allocation7 + $0x48] sm:$0xff]
    %v139 = vld [vmem:[#allocation7 + $0x50] sm:$0xff]
    %v140 = vld [vmem:[#allocation7 + $0x58] sm:$0xff]
    %v141 = vld [vmem:[#allocation7 + $0x60] sm:$0xff]
    %v142 = vld [vmem:[#allocation7 + $0x68] sm:$0xff]
    %v143 = vld [vmem:[#allocation7 + $0x70] sm:$0xff]
    %v144 = vld [vmem:[#allocation7 + $0x78] sm:$0xff]
    %v145 = vld [vmem:[%s2] sm:$0x1]
    %v147 = vperm.slane %v145, 0
    %149 = vmatpush.msra.mxu0 %v144
    %150 = vmatpush.msra.mxu0 %v143
    %151 = vmatpush.msra.mxu0 %v142
    %152 = vmatpush.msra.mxu0 %v141
    %153 = vmatpush.msra.mxu0 %v140
    %154 = vmatpush.msra.mxu0 %v139
    %155 = vmatpush.msra.mxu0 %v138
    %156 = vmatpush.msra.mxu0 %v137
    %157 = vmatpush.msra.mxu0 %v136
    %158 = vmatpush.msra.mxu0 %v135
    %159 = vmatpush.msra.mxu0 %v134
    %160 = vmatpush.msra.mxu0 %v133
    %161 = vmatpush.msra.mxu0 %v132
    %162 = vmatpush.msra.mxu0 %v131
    %163 = vmatpush.msra.mxu0 %v130
    %164 = vmatpush.msra.mxu0 %v129
    %165 = vmatmul.f32.gmra.mxu0 %v121
    %v166 = vpop.f32.mrf.mxu0
    %v167 = vadd.f32 %v147, %v166
    %168 = vmatmul.f32.gmra.mxu0 %v122
    %v169 = vpop.f32.mrf.mxu0
    %v170 = vadd.f32 %v147, %v169
    %171 = vmatmul.f32.gmra.mxu0 %v123
    %v172 = vpop.f32.mrf.mxu0
    %v173 = vadd.f32 %v147, %v172
    %174 = vmatmul.f32.gmra.mxu0 %v124
    %v175 = vpop.f32.mrf.mxu0
    %v176 = vadd.f32 %v147, %v175
    %177 = vmatmul.f32.gmra.mxu0 %v125
    %v178 = vpop.f32.mrf.mxu0
    %v179 = vadd.f32 %v147, %v178
    %180 = vmatmul.f32.gmra.mxu0 %v126
    %v181 = vpop.f32.mrf.mxu0
    %v182 = vadd.f32 %v147, %v181
    %183 = vmatmul.f32.gmra.mxu0 %v127
    %v184 = vpop.f32.mrf.mxu0
    %v185 = vadd.f32 %v147, %v184
    %186 = vmatmul.f32.gmra.mxu0 %v128
    %v187 = vpop.f32.mrf.mxu0
    %v188 = vadd.f32 %v147, %v187
    %189 = vdwg.mxu0
    %190 = vst [vmem:[#allocation2] sm:$0xff] %v167
    %191 = vst [vmem:[#allocation2 + $0x8] sm:$0xff] %v170
    %192 = vst [vmem:[#allocation2 + $0x10] sm:$0xff] %v173
    %193 = vst [vmem:[#allocation2 + $0x18] sm:$0xff] %v176
    %194 = vst [vmem:[#allocation2 + $0x20] sm:$0xff] %v179
    %195 = vst [vmem:[#allocation2 + $0x28] sm:$0xff] %v182
    %196 = vst [vmem:[#allocation2 + $0x30] sm:$0xff] %v185
    %197 = vst [vmem:[#allocation2 + $0x38] sm:$0xff] %v188
    %v198 = vld [vmem:[#allocation9] sm:$0xff]
    %v199 = vld [vmem:[#allocation10] sm:$0xff]
    %v200 = vld [vmem:[#allocation12] sm:$0xff]
    %v201 = vperm.slane %v198, 0
    %v202 = vperm.slane %v198, 1
    %v203 = vperm.slane %v198, 2
    %v204 = vperm.slane %v198, 3
    %v205 = vperm.slane %v199, 0
    %v206 = vperm.slane %v199, 1
    %v207 = vperm.slane %v199, 2
    %v208 = vperm.slane %v199, 3
    %v209 = vperm.slane %v200, 0
    %v210 = vperm.slane %v200, 1
    %v211 = vperm.slane %v200, 2
    %v212 = vperm.slane %v200, 3
    %v213 = vld [vmem:[%s6] sm:$0x1]
    %v215 = vperm.slane %v213, 0
    %v217 = vlaneseq
    %v218 = vand.u32 %v217, 127
    %vm219 = vcmp.ge.s32.totalorder %v218, 64
    %vm220 = vcmp.lt.s32.totalorder %v218, 96
    %vm221 = vmand %vm219, %vm220
    %v222 = vmul.f32 %v209, 0.0
    %v223 = vadd.f32 %v215, %v222
    %v224 = vmul.f32 %v210, 0.0
    %v225 = vadd.f32 %v223, %v224
    %v226 = vmul.f32 %v211, 0.0
    %v227 = vadd.f32 %v225, %v226
    %v228 = vmul.f32 %v212, 0.0
    %v229 = vadd.f32 %v227, %v228
    %v230 = vld [vmem:[#allocation2] sm:$0xff]
    %v231 = vmul.f32 %v201, 0.0
    %v232 = vadd.f32 %v230, %v231
    %v233 = vmul.f32 %v202, 0.0
    %v234 = vadd.f32 %v232, %v233
    %v235 = vmul.f32 %v203, 0.0
    %v236 = vadd.f32 %v234, %v235
    %v237 = vmul.f32 %v204, 0.0
    %v238 = vadd.f32 %v236, %v237
    %v239 = vtanh.pop %v238
    %v240 = vmul.f32 %v239, 0.5
    %v241 = vadd.f32 %v240, 0.5
    %v242 = vsel %vm221, %v239, %v241
    %v243 = vmul.f32 %v242, 0.0
    %245 = vrot.lane.b32.xlu0 %v242, 64
    %v246 = vpop.permute.xlu0 %245
    %v248 = vmul.f32 %v242, %v246
    %250 = vrot.lane.b32.xlu0 %v248, 32
    %v251 = vpop.permute.xlu0 %250
    %v253 = vadd.f32 %v243, %v251
    %v254 = vtanh.pop %v253
    %256 = vrot.lane.b32.xlu0 %v254, 64
    %v257 = vpop.permute.xlu0 %256
    %v259 = vmul.f32 %v242, %v257
    %261 = vset.pattern.permute.xlu0 96
    %262 = vperm.xlu0 %261, %v259
    %v263 = vpop.permute.xlu0 %262
    %v265 = vmul.f32 %v263, %v205
    %v266 = vadd.f32 %v229, %v265
    %267 = vset.pattern.permute.xlu0 97
    %268 = vperm.xlu0 %267, %v259
    %v269 = vpop.permute.xlu0 %268
    %v271 = vmul.f32 %v269, %v206
    %v272 = vadd.f32 %v266, %v271
    %273 = vset.pattern.permute.xlu0 98
    %274 = vperm.xlu0 %273, %v259
    %v275 = vpop.permute.xlu0 %274
    %v277 = vmul.f32 %v275, %v207
    %v278 = vadd.f32 %v272, %v277
    %279 = vset.pattern.permute.xlu0 99
    %280 = vperm.xlu0 %279, %v259
    %v281 = vpop.permute.xlu0 %280
    %v283 = vmul.f32 %v281, %v208
    %v284 = vadd.f32 %v278, %v283
    %v285 = vtanh.pop %v284
    %v286 = vmul.f32 %v285, 0.5
    %v287 = vadd.f32 %v286, 0.5
    %v288 = vsel %vm221, %v285, %v287
    %v289 = vmul.f32 %v288, 0.0
    %291 = vrot.lane.b32.xlu0 %v288, 64
    %v292 = vpop.permute.xlu0 %291
    %v294 = vmul.f32 %v288, %v292
    %296 = vrot.lane.b32.xlu0 %v294, 32
    %v297 = vpop.permute.xlu0 %296
    %v299 = vadd.f32 %v289, %v297
    %v300 = vtanh.pop %v299
    %302 = vrot.lane.b32.xlu0 %v300, 64
    %v303 = vpop.permute.xlu0 %302
    %v305 = vmul.f32 %v288, %v303
    %307 = vrot.lane.b32.xlu0 %v305, 32
    %v308 = vpop.permute.xlu0 %307
    %vm310 = vcmask 261120
    %311 = vst.msk [vmem:[#allocation3] sm:$0xff] %vm310, %v308
    %312 = vset.pattern.permute.xlu0 96
    %313 = vperm.xlu0 %312, %v305
    %v314 = vpop.permute.xlu0 %313
    %v316 = vmul.f32 %v314, %v209
    %v317 = vadd.f32 %v215, %v316
    %318 = vset.pattern.permute.xlu0 97
    %319 = vperm.xlu0 %318, %v305
    %v320 = vpop.permute.xlu0 %319
    %v322 = vmul.f32 %v320, %v210
    %v323 = vadd.f32 %v317, %v322
    %324 = vset.pattern.permute.xlu0 98
    %325 = vperm.xlu0 %324, %v305
    %v326 = vpop.permute.xlu0 %325
    %v328 = vmul.f32 %v326, %v211
    %v329 = vadd.f32 %v323, %v328
    %330 = vset.pattern.permute.xlu0 99
    %331 = vperm.xlu0 %330, %v305
    %v332 = vpop.permute.xlu0 %331
    %v334 = vmul.f32 %v332, %v212
    %v335 = vadd.f32 %v329, %v334
    %s336 = scalar_lea.vmem [#allocation2], 8
    %v337 = vld [vmem:[%s336] sm:$0xff]
    %v338 = vmul.f32 %v263, %v201
    %v339 = vadd.f32 %v337, %v338
    %v340 = vmul.f32 %v269, %v202
    %v341 = vadd.f32 %v339, %v340
    %v342 = vmul.f32 %v275, %v203
    %v343 = vadd.f32 %v341, %v342
    %v344 = vmul.f32 %v281, %v204
    %v345 = vadd.f32 %v343, %v344
    %v346 = vtanh.pop %v345
    %v347 = vmul.f32 %v346, 0.5
    %v348 = vadd.f32 %v347, 0.5
    %v349 = vsel %vm221, %v346, %v348
    %v350 = vmul.f32 %v349, %v253
    %352 = vrot.lane.b32.xlu0 %v349, 64
    %v353 = vpop.permute.xlu0 %352
    %v355 = vmul.f32 %v349, %v353
    %357 = vrot.lane.b32.xlu0 %v355, 32
    %v358 = vpop.permute.xlu0 %357
    %v360 = vadd.f32 %v350, %v358
    %v361 = vtanh.pop %v360
    %363 = vrot.lane.b32.xlu0 %v361, 64
    %v364 = vpop.permute.xlu0 %363
    %v366 = vmul.f32 %v349, %v364
    %368 = vset.pattern.permute.xlu0 96
    %369 = vperm.xlu0 %368, %v366
    %v370 = vpop.permute.xlu0 %369
    %v372 = vmul.f32 %v370, %v205
    %v373 = vadd.f32 %v335, %v372
    %374 = vset.pattern.permute.xlu0 97
    %375 = vperm.xlu0 %374, %v366
    %v376 = vpop.permute.xlu0 %375
    %v378 = vmul.f32 %v376, %v206
    %v379 = vadd.f32 %v373, %v378
    %380 = vset.pattern.permute.xlu0 98
    %381 = vperm.xlu0 %380, %v366
    %v382 = vpop.permute.xlu0 %381
    %v384 = vmul.f32 %v382, %v207
    %v385 = vadd.f32 %v379, %v384
    %386 = vset.pattern.permute.xlu0 99
    %387 = vperm.xlu0 %386, %v366
    %v388 = vpop.permute.xlu0 %387
    %v390 = vmul.f32 %v388, %v208
    %v391 = vadd.f32 %v385, %v390
    %v392 = vtanh.pop %v391
    %v393 = vmul.f32 %v392, 0.5
    %v394 = vadd.f32 %v393, 0.5
    %v395 = vsel %vm221, %v392, %v394
    %v396 = vmul.f32 %v395, %v299
    %398 = vrot.lane.b32.xlu0 %v395, 64
    %v399 = vpop.permute.xlu0 %398
    %v401 = vmul.f32 %v395, %v399
    %403 = vrot.lane.b32.xlu0 %v401, 32
    %v404 = vpop.permute.xlu0 %403
    %v406 = vadd.f32 %v396, %v404
    %v407 = vtanh.pop %v406
    %409 = vrot.lane.b32.xlu0 %v407, 64
    %v410 = vpop.permute.xlu0 %409
    %v412 = vmul.f32 %v395, %v410
    %414 = vrot.lane.b32.xlu0 %v412, 32
    %v415 = vpop.permute.xlu0 %414
    %s417 = scalar_lea.vmem [#allocation3], 8
    %418 = vst.msk [vmem:[%s417] sm:$0xff] %vm310, %v415
    %419 = vset.pattern.permute.xlu0 96
    %420 = vperm.xlu0 %419, %v412
    %v421 = vpop.permute.xlu0 %420
    %v423 = vmul.f32 %v421, %v209
    %v424 = vadd.f32 %v215, %v423
    %425 = vset.pattern.permute.xlu0 97
    %426 = vperm.xlu0 %425, %v412
    %v427 = vpop.permute.xlu0 %426
    %v429 = vmul.f32 %v427, %v210
    %v430 = vadd.f32 %v424, %v429
    %431 = vset.pattern.permute.xlu0 98
    %432 = vperm.xlu0 %431, %v412
    %v433 = vpop.permute.xlu0 %432
    %v435 = vmul.f32 %v433, %v211
    %v436 = vadd.f32 %v430, %v435
    %437 = vset.pattern.permute.xlu0 99
    %438 = vperm.xlu0 %437, %v412
    %v439 = vpop.permute.xlu0 %438
    %v441 = vmul.f32 %v439, %v212
    %v442 = vadd.f32 %v436, %v441
    %s443 = scalar_lea.vmem [#allocation2], 16
    %v444 = vld [vmem:[%s443] sm:$0xff]
    %v445 = vmul.f32 %v370, %v201
    %v446 = vadd.f32 %v444, %v445
    %v447 = vmul.f32 %v376, %v202
    %v448 = vadd.f32 %v446, %v447
    %v449 = vmul.f32 %v382, %v203
    %v450 = vadd.f32 %v448, %v449
    %v451 = vmul.f32 %v388, %v204
    %v452 = vadd.f32 %v450, %v451
    %v453 = vtanh.pop %v452
    %v454 = vmul.f32 %v453, 0.5
    %v455 = vadd.f32 %v454, 0.5
    %v456 = vsel %vm221, %v453, %v455
    %v457 = vmul.f32 %v456, %v360
    %459 = vrot.lane.b32.xlu0 %v456, 64
    %v460 = vpop.permute.xlu0 %459
    %v462 = vmul.f32 %v456, %v460
    %464 = vrot.lane.b32.xlu0 %v462, 32
    %v465 = vpop.permute.xlu0 %464
    %v467 = vadd.f32 %v457, %v465
    %v468 = vtanh.pop %v467
    %470 = vrot.lane.b32.xlu0 %v468, 64
    %v471 = vpop.permute.xlu0 %470
    %v473 = vmul.f32 %v456, %v471
    %475 = vset.pattern.permute.xlu0 96
    %476 = vperm.xlu0 %475, %v473
    %v477 = vpop.permute.xlu0 %476
    %v479 = vmul.f32 %v477, %v205
    %v480 = vadd.f32 %v442, %v479
    %481 = vset.pattern.permute.xlu0 97
    %482 = vperm.xlu0 %481, %v473
    %v483 = vpop.permute.xlu0 %482
    %v485 = vmul.f32 %v483, %v206
    %v486 = vadd.f32 %v480, %v485
    %487 = vset.pattern.permute.xlu0 98
    %488 = vperm.xlu0 %487, %v473
    %v489 = vpop.permute.xlu0 %488
    %v491 = vmul.f32 %v489, %v207
    %v492 = vadd.f32 %v486, %v491
    %493 = vset.pattern.permute.xlu0 99
    %494 = vperm.xlu0 %493, %v473
    %v495 = vpop.permute.xlu0 %494
    %v497 = vmul.f32 %v495, %v208
    %v498 = vadd.f32 %v492, %v497
    %v499 = vtanh.pop %v498
    %v500 = vmul.f32 %v499, 0.5
    %v501 = vadd.f32 %v500, 0.5
    %v502 = vsel %vm221, %v499, %v501
    %v503 = vmul.f32 %v502, %v406
    %505 = vrot.lane.b32.xlu0 %v502, 64
    %v506 = vpop.permute.xlu0 %505
    %v508 = vmul.f32 %v502, %v506
    %510 = vrot.lane.b32.xlu0 %v508, 32
    %v511 = vpop.permute.xlu0 %510
    %v513 = vadd.f32 %v503, %v511
    %v514 = vtanh.pop %v513
    %516 = vrot.lane.b32.xlu0 %v514, 64
    %v517 = vpop.permute.xlu0 %516
    %v519 = vmul.f32 %v502, %v517
    %521 = vrot.lane.b32.xlu0 %v519, 32
    %v522 = vpop.permute.xlu0 %521
    %s524 = scalar_lea.vmem [#allocation3], 16
    %525 = vst.msk [vmem:[%s524] sm:$0xff] %vm310, %v522
    %526 = vset.pattern.permute.xlu0 96
    %527 = vperm.xlu0 %526, %v519
    %v528 = vpop.permute.xlu0 %527
    %v530 = vmul.f32 %v528, %v209
    %v531 = vadd.f32 %v215, %v530
    %532 = vset.pattern.permute.xlu0 97
    %533 = vperm.xlu0 %532, %v519
    %v534 = vpop.permute.xlu0 %533
    %v536 = vmul.f32 %v534, %v210
    %v537 = vadd.f32 %v531, %v536
    %538 = vset.pattern.permute.xlu0 98
    %539 = vperm.xlu0 %538, %v519
    %v540 = vpop.permute.xlu0 %539
    %v542 = vmul.f32 %v540, %v211
    %v543 = vadd.f32 %v537, %v542
    %544 = vset.pattern.permute.xlu0 99
    %545 = vperm.xlu0 %544, %v519
    %v546 = vpop.permute.xlu0 %545
    %v548 = vmul.f32 %v546, %v212
    %v549 = vadd.f32 %v543, %v548
    %s550 = scalar_lea.vmem [#allocation2], 24
    %v551 = vld [vmem:[%s550] sm:$0xff]
    %v552 = vmul.f32 %v477, %v201
    %v553 = vadd.f32 %v551, %v552
    %v554 = vmul.f32 %v483, %v202
    %v555 = vadd.f32 %v553, %v554
    %v556 = vmul.f32 %v489, %v203
    %v557 = vadd.f32 %v555, %v556
    %v558 = vmul.f32 %v495, %v204
    %v559 = vadd.f32 %v557, %v558
    %v560 = vtanh.pop %v559
    %v561 = vmul.f32 %v560, 0.5
    %v562 = vadd.f32 %v561, 0.5
    %v563 = vsel %vm221, %v560, %v562
    %v564 = vmul.f32 %v563, %v467
    %566 = vrot.lane.b32.xlu0 %v563, 64
    %v567 = vpop.permute.xlu0 %566
    %v569 = vmul.f32 %v563, %v567
    %571 = vrot.lane.b32.xlu0 %v569, 32
    %v572 = vpop.permute.xlu0 %571
    %v574 = vadd.f32 %v564, %v572
    %v575 = vtanh.pop %v574
    %577 = vrot.lane.b32.xlu0 %v575, 64
    %v578 = vpop.permute.xlu0 %577
    %v580 = vmul.f32 %v563, %v578
    %582 = vset.pattern.permute.xlu0 96
    %583 = vperm.xlu0 %582, %v580
    %v584 = vpop.permute.xlu0 %583
    %v586 = vmul.f32 %v584, %v205
    %v587 = vadd.f32 %v549, %v586
    %588 = vset.pattern.permute.xlu0 97
    %589 = vperm.xlu0 %588, %v580
    %v590 = vpop.permute.xlu0 %589
    %v592 = vmul.f32 %v590, %v206
    %v593 = vadd.f32 %v587, %v592
    %594 = vset.pattern.permute.xlu0 98
    %595 = vperm.xlu0 %594, %v580
    %v596 = vpop.permute.xlu0 %595
    %v598 = vmul.f32 %v596, %v207
    %v599 = vadd.f32 %v593, %v598
    %600 = vset.pattern.permute.xlu0 99
    %601 = vperm.xlu0 %600, %v580
    %v602 = vpop.permute.xlu0 %601
    %v604 = vmul.f32 %v602, %v208
    %v605 = vadd.f32 %v599, %v604
    %v606 = vtanh.pop %v605
    %v607 = vmul.f32 %v606, 0.5
    %v608 = vadd.f32 %v607, 0.5
    %v609 = vsel %vm221, %v606, %v608
    %v610 = vmul.f32 %v609, %v513
    %612 = vrot.lane.b32.xlu0 %v609, 64
    %v613 = vpop.permute.xlu0 %612
    %v615 = vmul.f32 %v609, %v613
    %617 = vrot.lane.b32.xlu0 %v615, 32
    %v618 = vpop.permute.xlu0 %617
    %v620 = vadd.f32 %v610, %v618
    %v621 = vtanh.pop %v620
    %623 = vrot.lane.b32.xlu0 %v621, 64
    %v624 = vpop.permute.xlu0 %623
    %v626 = vmul.f32 %v609, %v624
    %628 = vrot.lane.b32.xlu0 %v626, 32
    %v629 = vpop.permute.xlu0 %628
    %s631 = scalar_lea.vmem [#allocation3], 24
    %632 = vst.msk [vmem:[%s631] sm:$0xff] %vm310, %v629
    %633 = vset.pattern.permute.xlu0 96
    %634 = vperm.xlu0 %633, %v626
    %v635 = vpop.permute.xlu0 %634
    %v637 = vmul.f32 %v635, %v209
    %v638 = vadd.f32 %v215, %v637
    %639 = vset.pattern.permute.xlu0 97
    %640 = vperm.xlu0 %639, %v626
    %v641 = vpop.permute.xlu0 %640
    %v643 = vmul.f32 %v641, %v210
    %v644 = vadd.f32 %v638, %v643
    %645 = vset.pattern.permute.xlu0 98
    %646 = vperm.xlu0 %645, %v626
    %v647 = vpop.permute.xlu0 %646
    %v649 = vmul.f32 %v647, %v211
    %v650 = vadd.f32 %v644, %v649
    %651 = vset.pattern.permute.xlu0 99
    %652 = vperm.xlu0 %651, %v626
    %v653 = vpop.permute.xlu0 %652
    %v655 = vmul.f32 %v653, %v212
    %v656 = vadd.f32 %v650, %v655
    %s657 = scalar_lea.vmem [#allocation2], 32
    %v658 = vld [vmem:[%s657] sm:$0xff]
    %v659 = vmul.f32 %v584, %v201
    %v660 = vadd.f32 %v658, %v659
    %v661 = vmul.f32 %v590, %v202
    %v662 = vadd.f32 %v660, %v661
    %v663 = vmul.f32 %v596, %v203
    %v664 = vadd.f32 %v662, %v663
    %v665 = vmul.f32 %v602, %v204
    %v666 = vadd.f32 %v664, %v665
    %v667 = vtanh.pop %v666
    %v668 = vmul.f32 %v667, 0.5
    %v669 = vadd.f32 %v668, 0.5
    %v670 = vsel %vm221, %v667, %v669
    %v671 = vmul.f32 %v670, %v574
    %673 = vrot.lane.b32.xlu0 %v670, 64
    %v674 = vpop.permute.xlu0 %673
    %v676 = vmul.f32 %v670, %v674
    %678 = vrot.lane.b32.xlu0 %v676, 32
    %v679 = vpop.permute.xlu0 %678
    %v681 = vadd.f32 %v671, %v679
    %v682 = vtanh.pop %v681
    %684 = vrot.lane.b32.xlu0 %v682, 64
    %v685 = vpop.permute.xlu0 %684
    %v687 = vmul.f32 %v670, %v685
    %689 = vset.pattern.permute.xlu0 96
    %690 = vperm.xlu0 %689, %v687
    %v691 = vpop.permute.xlu0 %690
    %v693 = vmul.f32 %v691, %v205
    %v694 = vadd.f32 %v656, %v693
    %695 = vset.pattern.permute.xlu0 97
    %696 = vperm.xlu0 %695, %v687
    %v697 = vpop.permute.xlu0 %696
    %v699 = vmul.f32 %v697, %v206
    %v700 = vadd.f32 %v694, %v699
    %701 = vset.pattern.permute.xlu0 98
    %702 = vperm.xlu0 %701, %v687
    %v703 = vpop.permute.xlu0 %702
    %v705 = vmul.f32 %v703, %v207
    %v706 = vadd.f32 %v700, %v705
    %707 = vset.pattern.permute.xlu0 99
    %708 = vperm.xlu0 %707, %v687
    %v709 = vpop.permute.xlu0 %708
    %v711 = vmul.f32 %v709, %v208
    %v712 = vadd.f32 %v706, %v711
    %v713 = vtanh.pop %v712
    %v714 = vmul.f32 %v713, 0.5
    %v715 = vadd.f32 %v714, 0.5
    %v716 = vsel %vm221, %v713, %v715
    %v717 = vmul.f32 %v716, %v620
    %719 = vrot.lane.b32.xlu0 %v716, 64
    %v720 = vpop.permute.xlu0 %719
    %v722 = vmul.f32 %v716, %v720
    %724 = vrot.lane.b32.xlu0 %v722, 32
    %v725 = vpop.permute.xlu0 %724
    %v727 = vadd.f32 %v717, %v725
    %v728 = vtanh.pop %v727
    %730 = vrot.lane.b32.xlu0 %v728, 64
    %v731 = vpop.permute.xlu0 %730
    %v733 = vmul.f32 %v716, %v731
    %735 = vrot.lane.b32.xlu0 %v733, 32
    %v736 = vpop.permute.xlu0 %735
    %s738 = scalar_lea.vmem [#allocation3], 32
    %739 = vst.msk [vmem:[%s738] sm:$0xff] %vm310, %v736
    %740 = vset.pattern.permute.xlu0 96
    %741 = vperm.xlu0 %740, %v733
    %v742 = vpop.permute.xlu0 %741
    %v744 = vmul.f32 %v742, %v209
    %v745 = vadd.f32 %v215, %v744
    %746 = vset.pattern.permute.xlu0 97
    %747 = vperm.xlu0 %746, %v733
    %v748 = vpop.permute.xlu0 %747
    %v750 = vmul.f32 %v748, %v210
    %v751 = vadd.f32 %v745, %v750
    %752 = vset.pattern.permute.xlu0 98
    %753 = vperm.xlu0 %752, %v733
    %v754 = vpop.permute.xlu0 %753
    %v756 = vmul.f32 %v754, %v211
    %v757 = vadd.f32 %v751, %v756
    %758 = vset.pattern.permute.xlu0 99
    %759 = vperm.xlu0 %758, %v733
    %v760 = vpop.permute.xlu0 %759
    %v762 = vmul.f32 %v760, %v212
    %v763 = vadd.f32 %v757, %v762
    %s764 = scalar_lea.vmem [#allocation2], 40
    %v765 = vld [vmem:[%s764] sm:$0xff]
    %v766 = vmul.f32 %v691, %v201
    %v767 = vadd.f32 %v765, %v766
    %v768 = vmul.f32 %v697, %v202
    %v769 = vadd.f32 %v767, %v768
    %v770 = vmul.f32 %v703, %v203
    %v771 = vadd.f32 %v769, %v770
    %v772 = vmul.f32 %v709, %v204
    %v773 = vadd.f32 %v771, %v772
    %v774 = vtanh.pop %v773
    %v775 = vmul.f32 %v774, 0.5
    %v776 = vadd.f32 %v775, 0.5
    %v777 = vsel %vm221, %v774, %v776
    %v778 = vmul.f32 %v777, %v681
    %780 = vrot.lane.b32.xlu0 %v777, 64
    %v781 = vpop.permute.xlu0 %780
    %v783 = vmul.f32 %v777, %v781
    %785 = vrot.lane.b32.xlu0 %v783, 32
    %v786 = vpop.permute.xlu0 %785
    %v788 = vadd.f32 %v778, %v786
    %v789 = vtanh.pop %v788
    %791 = vrot.lane.b32.xlu0 %v789, 64
    %v792 = vpop.permute.xlu0 %791
    %v794 = vmul.f32 %v777, %v792
    %796 = vset.pattern.permute.xlu0 96
    %797 = vperm.xlu0 %796, %v794
    %v798 = vpop.permute.xlu0 %797
    %v800 = vmul.f32 %v798, %v205
    %v801 = vadd.f32 %v763, %v800
    %802 = vset.pattern.permute.xlu0 97
    %803 = vperm.xlu0 %802, %v794
    %v804 = vpop.permute.xlu0 %803
    %v806 = vmul.f32 %v804, %v206
    %v807 = vadd.f32 %v801, %v806
    %808 = vset.pattern.permute.xlu0 98
    %809 = vperm.xlu0 %808, %v794
    %v810 = vpop.permute.xlu0 %809
    %v812 = vmul.f32 %v810, %v207
    %v813 = vadd.f32 %v807, %v812
    %814 = vset.pattern.permute.xlu0 99
    %815 = vperm.xlu0 %814, %v794
    %v816 = vpop.permute.xlu0 %815
    %v818 = vmul.f32 %v816, %v208
    %v819 = vadd.f32 %v813, %v818
    %v820 = vtanh.pop %v819
    %v821 = vmul.f32 %v820, 0.5
    %v822 = vadd.f32 %v821, 0.5
    %v823 = vsel %vm221, %v820, %v822
    %v824 = vmul.f32 %v823, %v727
    %826 = vrot.lane.b32.xlu0 %v823, 64
    %v827 = vpop.permute.xlu0 %826
    %v829 = vmul.f32 %v823, %v827
    %831 = vrot.lane.b32.xlu0 %v829, 32
    %v832 = vpop.permute.xlu0 %831
    %v834 = vadd.f32 %v824, %v832
    %v835 = vtanh.pop %v834
    %837 = vrot.lane.b32.xlu0 %v835, 64
    %v838 = vpop.permute.xlu0 %837
    %v840 = vmul.f32 %v823, %v838
    %842 = vrot.lane.b32.xlu0 %v840, 32
    %v843 = vpop.permute.xlu0 %842
    %s845 = scalar_lea.vmem [#allocation3], 40
    %846 = vst.msk [vmem:[%s845] sm:$0xff] %vm310, %v843
    %847 = vset.pattern.permute.xlu0 96
    %848 = vperm.xlu0 %847, %v840
    %v849 = vpop.permute.xlu0 %848
    %v851 = vmul.f32 %v849, %v209
    %v852 = vadd.f32 %v215, %v851
    %853 = vset.pattern.permute.xlu0 97
    %854 = vperm.xlu0 %853, %v840
    %v855 = vpop.permute.xlu0 %854
    %v857 = vmul.f32 %v855, %v210
    %v858 = vadd.f32 %v852, %v857
    %859 = vset.pattern.permute.xlu0 98
    %860 = vperm.xlu0 %859, %v840
    %v861 = vpop.permute.xlu0 %860
    %v863 = vmul.f32 %v861, %v211
    %v864 = vadd.f32 %v858, %v863
    %865 = vset.pattern.permute.xlu0 99
    %866 = vperm.xlu0 %865, %v840
    %v867 = vpop.permute.xlu0 %866
    %v869 = vmul.f32 %v867, %v212
    %v870 = vadd.f32 %v864, %v869
    %s871 = scalar_lea.vmem [#allocation2], 48
    %v872 = vld [vmem:[%s871] sm:$0xff]
    %v873 = vmul.f32 %v798, %v201
    %v874 = vadd.f32 %v872, %v873
    %v875 = vmul.f32 %v804, %v202
    %v876 = vadd.f32 %v874, %v875
    %v877 = vmul.f32 %v810, %v203
    %v878 = vadd.f32 %v876, %v877
    %v879 = vmul.f32 %v816, %v204
    %v880 = vadd.f32 %v878, %v879
    %v881 = vtanh.pop %v880
    %v882 = vmul.f32 %v881, 0.5
    %v883 = vadd.f32 %v882, 0.5
    %v884 = vsel %vm221, %v881, %v883
    %v885 = vmul.f32 %v884, %v788
    %887 = vrot.lane.b32.xlu0 %v884, 64
    %v888 = vpop.permute.xlu0 %887
    %v890 = vmul.f32 %v884, %v888
    %892 = vrot.lane.b32.xlu0 %v890, 32
    %v893 = vpop.permute.xlu0 %892
    %v895 = vadd.f32 %v885, %v893
    %v896 = vtanh.pop %v895
    %898 = vrot.lane.b32.xlu0 %v896, 64
    %v899 = vpop.permute.xlu0 %898
    %v901 = vmul.f32 %v884, %v899
    %903 = vset.pattern.permute.xlu0 96
    %904 = vperm.xlu0 %903, %v901
    %v905 = vpop.permute.xlu0 %904
    %v907 = vmul.f32 %v905, %v205
    %v908 = vadd.f32 %v870, %v907
    %909 = vset.pattern.permute.xlu0 97
    %910 = vperm.xlu0 %909, %v901
    %v911 = vpop.permute.xlu0 %910
    %v913 = vmul.f32 %v911, %v206
    %v914 = vadd.f32 %v908, %v913
    %915 = vset.pattern.permute.xlu0 98
    %916 = vperm.xlu0 %915, %v901
    %v917 = vpop.permute.xlu0 %916
    %v919 = vmul.f32 %v917, %v207
    %v920 = vadd.f32 %v914, %v919
    %921 = vset.pattern.permute.xlu0 99
    %922 = vperm.xlu0 %921, %v901
    %v923 = vpop.permute.xlu0 %922
    %v925 = vmul.f32 %v923, %v208
    %v926 = vadd.f32 %v920, %v925
    %v927 = vtanh.pop %v926
    %v928 = vmul.f32 %v927, 0.5
    %v929 = vadd.f32 %v928, 0.5
    %v930 = vsel %vm221, %v927, %v929
    %v931 = vmul.f32 %v930, %v834
    %933 = vrot.lane.b32.xlu0 %v930, 64
    %v934 = vpop.permute.xlu0 %933
    %v936 = vmul.f32 %v930, %v934
    %938 = vrot.lane.b32.xlu0 %v936, 32
    %v939 = vpop.permute.xlu0 %938
    %v941 = vadd.f32 %v931, %v939
    %v942 = vtanh.pop %v941
    %944 = vrot.lane.b32.xlu0 %v942, 64
    %v945 = vpop.permute.xlu0 %944
    %v947 = vmul.f32 %v930, %v945
    %949 = vrot.lane.b32.xlu0 %v947, 32
    %v950 = vpop.permute.xlu0 %949
    %s952 = scalar_lea.vmem [#allocation3], 48
    %953 = vst.msk [vmem:[%s952] sm:$0xff] %vm310, %v950
    %954 = vset.pattern.permute.xlu0 96
    %955 = vperm.xlu0 %954, %v947
    %v956 = vpop.permute.xlu0 %955
    %v958 = vmul.f32 %v956, %v209
    %v959 = vadd.f32 %v215, %v958
    %960 = vset.pattern.permute.xlu0 97
    %961 = vperm.xlu0 %960, %v947
    %v962 = vpop.permute.xlu0 %961
    %v964 = vmul.f32 %v962, %v210
    %v965 = vadd.f32 %v959, %v964
    %966 = vset.pattern.permute.xlu0 98
    %967 = vperm.xlu0 %966, %v947
    %v968 = vpop.permute.xlu0 %967
    %v970 = vmul.f32 %v968, %v211
    %v971 = vadd.f32 %v965, %v970
    %972 = vset.pattern.permute.xlu0 99
    %973 = vperm.xlu0 %972, %v947
    %v974 = vpop.permute.xlu0 %973
    %v976 = vmul.f32 %v974, %v212
    %v977 = vadd.f32 %v971, %v976
    %s978 = scalar_lea.vmem [#allocation2], 56
    %v979 = vld [vmem:[%s978] sm:$0xff]
    %v980 = vmul.f32 %v905, %v201
    %v981 = vadd.f32 %v979, %v980
    %v982 = vmul.f32 %v911, %v202
    %v983 = vadd.f32 %v981, %v982
    %v984 = vmul.f32 %v917, %v203
    %v985 = vadd.f32 %v983, %v984
    %v986 = vmul.f32 %v923, %v204
    %v987 = vadd.f32 %v985, %v986
    %v988 = vtanh.pop %v987
    %v989 = vmul.f32 %v988, 0.5
    %v990 = vadd.f32 %v989, 0.5
    %v991 = vsel %vm221, %v988, %v990
    %v992 = vmul.f32 %v991, %v895
    %994 = vrot.lane.b32.xlu0 %v991, 64
    %v995 = vpop.permute.xlu0 %994
    %v997 = vmul.f32 %v991, %v995
    %999 = vrot.lane.b32.xlu0 %v997, 32
    %v1000 = vpop.permute.xlu0 %999
    %v1002 = vadd.f32 %v992, %v1000
    %v1003 = vtanh.pop %v1002
    %1005 = vrot.lane.b32.xlu0 %v1003, 64
    %v1006 = vpop.permute.xlu0 %1005
    %v1008 = vmul.f32 %v991, %v1006
    %1010 = vset.pattern.permute.xlu0 96
    %1011 = vperm.xlu0 %1010, %v1008
    %v1012 = vpop.permute.xlu0 %1011
    %v1014 = vmul.f32 %v1012, %v205
    %v1015 = vadd.f32 %v977, %v1014
    %1016 = vset.pattern.permute.xlu0 97
    %1017 = vperm.xlu0 %1016, %v1008
    %v1018 = vpop.permute.xlu0 %1017
    %v1020 = vmul.f32 %v1018, %v206
    %v1021 = vadd.f32 %v1015, %v1020
    %1022 = vset.pattern.permute.xlu0 98
    %1023 = vperm.xlu0 %1022, %v1008
    %v1024 = vpop.permute.xlu0 %1023
    %v1026 = vmul.f32 %v1024, %v207
    %v1027 = vadd.f32 %v1021, %v1026
    %1028 = vset.pattern.permute.xlu0 99
    %1029 = vperm.xlu0 %1028, %v1008
    %v1030 = vpop.permute.xlu0 %1029
    %v1032 = vmul.f32 %v1030, %v208
    %v1033 = vadd.f32 %v1027, %v1032
    %v1034 = vtanh.pop %v1033
    %v1035 = vmul.f32 %v1034, 0.5
    %v1036 = vadd.f32 %v1035, 0.5
    %v1037 = vsel %vm221, %v1034, %v1036
    %v1038 = vmul.f32 %v1037, %v941
    %1040 = vrot.lane.b32.xlu0 %v1037, 64
    %v1041 = vpop.permute.xlu0 %1040
    %v1043 = vmul.f32 %v1037, %v1041
    %1045 = vrot.lane.b32.xlu0 %v1043, 32
    %v1046 = vpop.permute.xlu0 %1045
    %v1048 = vadd.f32 %v1038, %v1046
    %v1049 = vtanh.pop %v1048
    %1051 = vrot.lane.b32.xlu0 %v1049, 64
    %v1052 = vpop.permute.xlu0 %1051
    %v1054 = vmul.f32 %v1037, %v1052
    %1056 = vrot.lane.b32.xlu0 %v1054, 32
    %v1057 = vpop.permute.xlu0 %1056
    %s1059 = scalar_lea.vmem [#allocation3], 56
    %1060 = vst.msk [vmem:[%s1059] sm:$0xff] %vm310, %v1057
    %v1061 = vld [vmem:[#allocation3] sm:$0xff]
    %v1062 = vld [vmem:[#allocation3 + $0x8] sm:$0xff]
    %v1063 = vld [vmem:[#allocation3 + $0x10] sm:$0xff]
    %v1064 = vld [vmem:[#allocation3 + $0x18] sm:$0xff]
    %v1065 = vld [vmem:[#allocation3 + $0x20] sm:$0xff]
    %v1066 = vld [vmem:[#allocation3 + $0x28] sm:$0xff]
    %v1067 = vld [vmem:[#allocation3 + $0x30] sm:$0xff]
    %v1068 = vld [vmem:[#allocation3 + $0x38] sm:$0xff]
    %v1069 = vld [vmem:[#allocation13] sm:$0xff]
    %v1070 = vld [vmem:[#allocation13 + $0x8] sm:$0xff]
    %v1071 = vld [vmem:[#allocation13 + $0x10] sm:$0xff]
    %v1072 = vld [vmem:[#allocation13 + $0x18] sm:$0xff]
    %v1073 = vld [vmem:[%s8] sm:$0x1]
    %v1075 = vperm.slane %v1073, 0
    %v1078 = vsel %vm310, %v1061, 0
    %v1081 = vsel %vm310, %v1062, 0
    %v1084 = vsel %vm310, %v1063, 0
    %v1087 = vsel %vm310, %v1064, 0
    %v1090 = vsel %vm310, %v1065, 0
    %v1093 = vsel %vm310, %v1066, 0
    %v1096 = vsel %vm310, %v1067, 0
    %v1099 = vsel %vm310, %v1068, 0
    %1101 = vmatpush.msra.mxu0 0.0
    %1102 = vmatpush.msra.mxu0 0.0
    %1103 = vmatpush.msra.mxu0 0.0
    %1104 = vmatpush.msra.mxu0 0.0
    %1105 = vmatpush.msra.mxu0 0.0
    %1106 = vmatpush.msra.mxu0 0.0
    %1107 = vmatpush.msra.mxu0 0.0
    %1108 = vmatpush.msra.mxu0 0.0
    %1109 = vmatpush.msra.mxu0 0.0
    %1110 = vmatpush.msra.mxu0 0.0
    %1111 = vmatpush.msra.mxu0 0.0
    %1112 = vmatpush.msra.mxu0 0.0
    %1113 = vmatpush.msra.mxu0 %v1072
    %1114 = vmatpush.msra.mxu0 %v1071
    %1115 = vmatpush.msra.mxu0 %v1070
    %1116 = vmatpush.msra.mxu0 %v1069
    %1117 = vmatmul.f32.gmra.mxu0 %v1078
    %v1118 = vpop.f32.mrf.mxu0
    %v1119 = vadd.f32 %v1075, %v1118
    %1120 = vmatmul.f32.gmra.mxu0 %v1081
    %v1121 = vpop.f32.mrf.mxu0
    %v1122 = vadd.f32 %v1075, %v1121
    %1123 = vmatmul.f32.gmra.mxu0 %v1084
    %v1124 = vpop.f32.mrf.mxu0
    %v1125 = vadd.f32 %v1075, %v1124
    %1126 = vmatmul.f32.gmra.mxu0 %v1087
    %v1127 = vpop.f32.mrf.mxu0
    %v1128 = vadd.f32 %v1075, %v1127
    %1129 = vmatmul.f32.gmra.mxu0 %v1090
    %v1130 = vpop.f32.mrf.mxu0
    %v1131 = vadd.f32 %v1075, %v1130
    %1132 = vmatmul.f32.gmra.mxu0 %v1093
    %v1133 = vpop.f32.mrf.mxu0
    %v1134 = vadd.f32 %v1075, %v1133
    %1135 = vmatmul.f32.gmra.mxu0 %v1096
    %v1136 = vpop.f32.mrf.mxu0
    %v1137 = vadd.f32 %v1075, %v1136
    %1138 = vmatmul.f32.gmra.mxu0 %v1099
    %v1139 = vpop.f32.mrf.mxu0
    %v1140 = vadd.f32 %v1075, %v1139
    %1141 = vdwg.mxu0
    %1142 = vst [vmem:[#allocation15] sm:$0xff] %v1119
    %1143 = vst [vmem:[#allocation15 + $0x8] sm:$0xff] %v1122
    %1144 = vst [vmem:[#allocation15 + $0x10] sm:$0xff] %v1125
    %1145 = vst [vmem:[#allocation15 + $0x18] sm:$0xff] %v1128
    %1146 = vst [vmem:[#allocation15 + $0x20] sm:$0xff] %v1131
    %1147 = vst [vmem:[#allocation15 + $0x28] sm:$0xff] %v1134
    %1148 = vst [vmem:[#allocation15 + $0x30] sm:$0xff] %v1137
    %1149 = vst [vmem:[#allocation15 + $0x38] sm:$0xff] %v1140
    // Predicated region
    $region62: #{tpu_custom_call.1} parent=1 // pred_check
      _
    $region63: #{tpu_custom_call.1} parent=1 // pred_check_branch
      %1151 = sbr.rel (0) target = $region65
    $region64: #{tpu_custom_call.1} parent=1 // pred_region
      %1153 = vsyncadd [#allocation6], 0
      %s1154 = sshll.u32 [#allocation15], 4
      %s1155 = int_to_ptr.vmem [resolvable:$true] %s1154
      %s1156 = sshll.u32 %s9, 4
      %s1157 = int_to_ptr.hbm [resolvable:$true] %s1156
      %1162 = dma.vmem_to_hbm [thread:$0]  %s1155, 1024, %s1157, [#allocation6], 128, 128, 8
    $region65: #{tpu_custom_call.1} parent=1 // pred_fallthru
      _
    // Predicated region
    $region66: #{tpu_custom_call.1} parent=1 // pred_check
      _
    $region67: #{tpu_custom_call.1} parent=1 // pred_check_branch
      %1164 = sbr.rel (0) target = $region69
    $region68: #{tpu_custom_call.1} parent=1 // pred_region
      %1166 = dma.done [#allocation6], 1024
    $region69: #{tpu_custom_call.1} parent=1 // pred_fallthru
      _
    %1167 = vsyncpa [#allocation5], 1
    %1168 = vsyncpa [#allocation8], 1
    %1169 = vsyncpa [#allocation11], 1
    %1170 = vsyncpa [#allocation14], 1
    %1171 = vsyncpa [#allocation6], 1

</llo_original>
